<compile_context>
chip_gen: v7x
topology: tpu7x:2x2x1
jax: 0.10.0
libtpu: 0.0.40
codegen_flags: <defaults>
</compile_context>

<pallas_src>
import math
from functools import partial
from typing import NamedTuple

import jax
import jax.numpy as jnp
from jax.experimental import pallas as pl
from jax.experimental.pallas import tpu as pltpu


_STEM_FMA_MAX_CIN = 8   # use VPU FMAs instead of the MXU for the stem when C_in <= this


def _round_up(v, m):
    return (v + m - 1) // m * m


# ----------------------------------------------------------------------------- kernel
def _resnet_kernel(*refs, n_blocks):
    # refs layout: x, w0, b0, [wa, ba, wb, bb] * n_blocks, wout, bout, out
    x_ref, w0_ref, b0_ref = refs[0], refs[1], refs[2]
    blk_refs = refs[3:3 + 4 * n_blocks]
    wout_ref, bout_ref, out_ref = refs[3 + 4 * n_blocks:]

    def mm(a, w_ref):
        # MXU matmul in the weights' dtype (bf16 by default); f32 accumulation.
        w = w_ref[...]
        return jnp.dot(a.astype(w.dtype), w, preferred_element_type=jnp.float32)

    x = x_ref[...].astype(jnp.float32)
    c_in = x_ref.shape[1]

    # Stem: Linear(C_in, H) -> Tanh.  For tiny C_in skip the MXU entirely: the
    # [TM, C_in] x [C_in, H] product is C_in broadcast-FMAs on the VPU.
    if c_in <= _STEM_FMA_MAX_CIN:
        w0 = w0_ref[...].astype(jnp.float32)
        acc = x[:, 0:1] * w0[0:1, :]
        for k in range(1, c_in):
            acc = acc + x[:, k:k + 1] * w0[k:k + 1, :]
        h = jnp.tanh(acc + b0_ref[...])
    else:
        h = jnp.tanh(mm(x, w0_ref) + b0_ref[...])

    # ResBlocks: h = tanh(Linear(tanh(Linear(h))) + h)   (bias/residual/tanh in f32)
    for i in range(n_blocks):
        wa, ba, wb, bb = blk_refs[4 * i:4 * i + 4]
        t = jnp.tanh(mm(h, wa) + ba[...])
        t = mm(t, wb) + bb[...]
        h = jnp.tanh(t + h)

    # Head: Linear(H, Co_pad) -> Tanh  (padded cols are tanh(0) = 0)
    y = jnp.tanh(mm(h, wout_ref) + bout_ref[...])
    out_ref[...] = y.astype(out_ref.dtype)


# ------------------------------------------------------------------- param preparation
class PreparedParams(NamedTuple):
    operands: tuple      # w0, b0, [wa, ba, wb, bb]*n_blocks, wout, bout (cast/padded)
    c_in: int
    hidden: int
    c_out: int
    c_out_pad: int
    n_blocks: int


def prepare_params(params, *, matmul_dtype=jnp.bfloat16):
    """Cast / pad weights ONCE (outside the hot forward path)."""
    w0, b0, blocks, wout, bout = params
    c_in, hidden = w0.shape
    c_out = wout.shape[1]
    n_blocks = len(blocks)
    c_out_pad = _round_up(c_out, 128)          # lane-dense output stores

    stem_fma = c_in <= _STEM_FMA_MAX_CIN
    w0_c = w0.astype(jnp.float32 if stem_fma else matmul_dtype)

    wout_p = wout if c_out_pad == c_out else jnp.pad(wout, ((0, 0), (0, c_out_pad - c_out)))
    bout_p = bout if c_out_pad == c_out else jnp.pad(bout, ((0, c_out_pad - c_out),))

    ops = [w0_c, b0.reshape(1, hidden).astype(jnp.float32)]
    for (wa, ba, wb, bb) in blocks:
        ops += [wa.astype(matmul_dtype), ba.reshape(1, hidden).astype(jnp.float32),
                wb.astype(matmul_dtype), bb.reshape(1, hidden).astype(jnp.float32)]
    ops += [wout_p.astype(matmul_dtype), bout_p.reshape(1, c_out_pad).astype(jnp.float32)]
    ops = tuple(jax.block_until_ready(o) for o in ops)   # materialize once
    return PreparedParams(ops, c_in, hidden, c_out, c_out_pad, n_blocks)


# ------------------------------------------------------------------------------ forward
def resnet_forward(x, prep: PreparedParams, *, tile_m=256):
    """x: (B, C_in) f32 -> (B, C_out) f32, matching the PyTorch ResNet forward."""
    B, c_in = x.shape
    assert c_in == prep.c_in
    H, Co, Co_pad, n_blocks = prep.hidden, prep.c_out, prep.c_out_pad, prep.n_blocks

    # Batch tiling (rows per grid step, multiple of 8; ~256 saturates the MXU M dim).
    # For v7x latency at moderate B, pass tile_m ~= B/2 so both TensorCores get a tile.
    TM = _round_up(min(tile_m, _round_up(B, 8)), 8)
    B_pad = _round_up(B, TM)
    x_p = x if B_pad == B else jnp.pad(x, ((0, B_pad - B), (0, 0)))

    weight_bytes = sum(int(o.size) * o.dtype.itemsize for o in prep.operands)
    flops = 2 * B_pad * (c_in * H + 2 * n_blocks * H * H + H * Co_pad)
    transc = B_pad * (H * (1 + 2 * n_blocks) + Co_pad)
    bytes_accessed = (int(x_p.size) * x_p.dtype.itemsize + B_pad * Co_pad * 4
                      + weight_bytes)
    cost = pl.CostEstimate(flops=flops, transcendentals=transc,
                           bytes_accessed=bytes_accessed)

    kernel = partial(_resnet_kernel, n_blocks=n_blocks)

    def build(single_buffer_weights):
        def resident(shape):
            # Full-array block, constant index -> VMEM-resident across grid steps.
            # Single-buffered: its block never changes, so 2x buffers is wasted VMEM.
            if single_buffer_weights:
                return pl.BlockSpec(shape, lambda i: (0, 0),
                                    pipeline_mode=pl.Buffered(1))
            return pl.BlockSpec(shape, lambda i: (0, 0))

        in_specs = [pl.BlockSpec((TM, c_in), lambda i: (i, 0)),   # x: tiled over batch
                    resident((c_in, H)), resident((1, H))]
        for _ in range(n_blocks):
            in_specs += [resident((H, H)), resident((1, H)),
                         resident((H, H)), resident((1, H))]
        in_specs += [resident((H, Co_pad)), resident((1, Co_pad))]

        # VMEM budget: raise the scoped limit only if resident weights + activation
        # tiles approach the 32 MiB default (cap at 64 MiB = v7x physical VMEM).
        buf_mult = 1 if single_buffer_weights else 2
        act_bytes = 4 * TM * max(H, Co_pad) * 4
        io_bytes = 2 * (TM * c_in * 4 + TM * Co_pad * 4)
        need = buf_mult * weight_bytes + act_bytes + io_bytes
        vmem_limit = None
        if need > 30 * 1024 * 1024:
            vmem_limit = min(64 * 1024 * 1024, need + (8 << 20))

        return pl.pallas_call(
            kernel,
            out_shape=jax.ShapeDtypeStruct((B_pad, Co_pad), jnp.float32),
            grid=(B_pad // TM,),
            in_specs=in_specs,
            out_specs=pl.BlockSpec((TM, Co_pad), lambda i: (i, 0)),
            compiler_params=pltpu.CompilerParams(
                dimension_semantics=("parallel",),   # shard batch tiles across TCs
                vmem_limit_bytes=vmem_limit),
            cost_estimate=cost,
        )

    try:
        out = build(single_buffer_weights=True)(x_p, *prep.operands)
    except Exception:
        # Fallback for JAX versions without pipeline_mode support on BlockSpec.
        out = build(single_buffer_weights=False)(x_p, *prep.operands)

    return out[:B, :Co]


# ------------------------------------------------------------------- init & reference
def init_params(key, in_channels, outchannels, n_blocks=2, hiddensize=256):
    # Mimic torch.nn.Linear default init (uniform +/- 1/sqrt(fan_in)).
    # Weights stored transposed vs torch, i.e. (in, out), so the kernel does x @ W.
    def linear(k, fan_in, fan_out):
        kw, kb = jax.random.split(k)
        bound = 1.0 / math.sqrt(fan_in)
        w = jax.random.uniform(kw, (fan_in, fan_out), jnp.float32, -bound, bound)
        b = jax.random.uniform(kb, (fan_out,), jnp.float32, -bound, bound)
        return w, b

    keys = jax.random.split(key, 2 + 2 * n_blocks)
    w0, b0 = linear(keys[0], in_channels, hiddensize)
    blocks = []
    for i in range(n_blocks):
        wa, ba = linear(keys[1 + 2 * i], hiddensize, hiddensize)
        wb, bb = linear(keys[2 + 2 * i], hiddensize, hiddensize)
        blocks.append((wa, ba, wb, bb))
    wout, bout = linear(keys[1 + 2 * n_blocks], hiddensize, outchannels)
    return w0, b0, blocks, wout, bout


def resnet_reference(x, params):
    w0, b0, blocks, wout, bout = params
    hi = jax.lax.Precision.HIGHEST
    h = jnp.tanh(jnp.dot(x, w0, precision=hi) + b0)
    for (wa, ba, wb, bb) in blocks:
        t = jnp.tanh(jnp.dot(h, wa, precision=hi) + ba)
        t = jnp.dot(t, wb, precision=hi) + bb
        h = jnp.tanh(t + h)
    return jnp.tanh(jnp.dot(h, wout, precision=hi) + bout)


# ------------------------------------------------------------------------------- demo
if __name__ == "__main__":
    key = jax.random.PRNGKey(0)
    k_x, k_p = jax.random.split(key)

    batch = 8
    in_channels = 4
    outchannels = 3
    n_blocks = 2
    hiddensize = 256   # hard-coded in the PyTorch module

    x = jax.random.normal(k_x, (batch, in_channels), dtype=jnp.float32)
    params = init_params(k_p, in_channels, outchannels,
                         n_blocks=n_blocks, hiddensize=hiddensize)
    ref = resnet_reference(x, params)

    # Fast path (default): bf16 MXU, f32 accumulation.
    prep_bf16 = prepare_params(params)                        # matmul_dtype=bf16
    out = jax.block_until_ready(resnet_forward(x, prep_bf16))
    assert out.shape == (batch, outchannels)
    assert jnp.allclose(out, ref, atol=3e-2, rtol=3e-2)

    # Full-precision path: tight numerical check against the plain-JAX reference.
    prep_f32 = prepare_params(params, matmul_dtype=jnp.float32)
    out_f32 = jax.block_until_ready(resnet_forward(x, prep_f32))
    assert jnp.allclose(out_f32, ref, atol=1e-4, rtol=1e-4)

    print("KERNEL_OK")
</pallas_src>

<mosaic_0001>
module attributes {stable_mosaic.version = 11 : i64} {
  func.func @_resnet_kernel(%arg0: i32, %arg1: memref<8x4xf32, #tpu.memory_space<vmem>>, %arg2: memref<4x256xf32, #tpu.memory_space<vmem>>, %arg3: memref<1x256xf32, #tpu.memory_space<vmem>>, %arg4: memref<256x256xbf16, #tpu.memory_space<vmem>>, %arg5: memref<1x256xf32, #tpu.memory_space<vmem>>, %arg6: memref<256x256xbf16, #tpu.memory_space<vmem>>, %arg7: memref<1x256xf32, #tpu.memory_space<vmem>>, %arg8: memref<256x256xbf16, #tpu.memory_space<vmem>>, %arg9: memref<1x256xf32, #tpu.memory_space<vmem>>, %arg10: memref<256x256xbf16, #tpu.memory_space<vmem>>, %arg11: memref<1x256xf32, #tpu.memory_space<vmem>>, %arg12: memref<256x128xbf16, #tpu.memory_space<vmem>>, %arg13: memref<1x128xf32, #tpu.memory_space<vmem>>, %arg14: memref<8x128xf32, #tpu.memory_space<vmem>>) attributes {dimension_semantics = [#tpu.dimension_semantics<parallel>], iteration_bounds = array<i64: 1>, scalar_prefetch = 0 : i64, scratch_operands = 0 : i64, tpu.core_type = #tpu.core_type<tc>, window_params = [{transform_indices = @transform_0, window_bounds = array<i64: 8, 4>}, {pipeline_mode = #tpu.pipeline_mode<synchronous>, transform_indices = @transform_1, window_bounds = array<i64: 4, 256>}, {pipeline_mode = #tpu.pipeline_mode<synchronous>, transform_indices = @transform_2, window_bounds = array<i64: 1, 256>}, {pipeline_mode = #tpu.pipeline_mode<synchronous>, transform_indices = @transform_3, window_bounds = array<i64: 256, 256>}, {pipeline_mode = #tpu.pipeline_mode<synchronous>, transform_indices = @transform_4, window_bounds = array<i64: 1, 256>}, {pipeline_mode = #tpu.pipeline_mode<synchronous>, transform_indices = @transform_5, window_bounds = array<i64: 256, 256>}, {pipeline_mode = #tpu.pipeline_mode<synchronous>, transform_indices = @transform_6, window_bounds = array<i64: 1, 256>}, {pipeline_mode = #tpu.pipeline_mode<synchronous>, transform_indices = @transform_7, window_bounds = array<i64: 256, 256>}, {pipeline_mode = #tpu.pipeline_mode<synchronous>, transform_indices = @transform_8, window_bounds = array<i64: 1, 256>}, {pipeline_mode = #tpu.pipeline_mode<synchronous>, transform_indices = @transform_9, window_bounds = array<i64: 256, 256>}, {pipeline_mode = #tpu.pipeline_mode<synchronous>, transform_indices = @transform_10, window_bounds = array<i64: 1, 256>}, {pipeline_mode = #tpu.pipeline_mode<synchronous>, transform_indices = @transform_11, window_bounds = array<i64: 256, 128>}, {pipeline_mode = #tpu.pipeline_mode<synchronous>, transform_indices = @transform_12, window_bounds = array<i64: 1, 128>}, {transform_indices = @transform_13, window_bounds = array<i64: 8, 128>}]} {
    %c0 = arith.constant 0 : index
    %c0_0 = arith.constant 0 : index
    %0 = vector.load %arg1[%c0, %c0_0] : memref<8x4xf32, #tpu.memory_space<vmem>>, vector<8x4xf32>
    %c0_1 = arith.constant 0 : index
    %c0_2 = arith.constant 0 : index
    %1 = vector.load %arg2[%c0_1, %c0_2] : memref<4x256xf32, #tpu.memory_space<vmem>>, vector<4x256xf32>
    %2 = vector.extract_strided_slice %0 {offsets = [0, 0], sizes = [8, 1], strides = [1, 1]} : vector<8x4xf32> to vector<8x1xf32>
    %3 = vector.extract_strided_slice %1 {offsets = [0, 0], sizes = [1, 256], strides = [1, 1]} : vector<4x256xf32> to vector<1x256xf32>
    %4 = vector.broadcast %2 : vector<8x1xf32> to vector<8x256xf32>
    %5 = vector.broadcast %3 : vector<1x256xf32> to vector<8x256xf32>
    %6 = arith.mulf %4, %5 : vector<8x256xf32>
    %7 = vector.extract_strided_slice %0 {offsets = [0, 1], sizes = [8, 1], strides = [1, 1]} : vector<8x4xf32> to vector<8x1xf32>
    %8 = vector.extract_strided_slice %1 {offsets = [1, 0], sizes = [1, 256], strides = [1, 1]} : vector<4x256xf32> to vector<1x256xf32>
    %9 = vector.broadcast %7 : vector<8x1xf32> to vector<8x256xf32>
    %10 = vector.broadcast %8 : vector<1x256xf32> to vector<8x256xf32>
    %11 = arith.mulf %9, %10 : vector<8x256xf32>
    %12 = arith.addf %6, %11 : vector<8x256xf32>
    %13 = vector.extract_strided_slice %0 {offsets = [0, 2], sizes = [8, 1], strides = [1, 1]} : vector<8x4xf32> to vector<8x1xf32>
    %14 = vector.extract_strided_slice %1 {offsets = [2, 0], sizes = [1, 256], strides = [1, 1]} : vector<4x256xf32> to vector<1x256xf32>
    %15 = vector.broadcast %13 : vector<8x1xf32> to vector<8x256xf32>
    %16 = vector.broadcast %14 : vector<1x256xf32> to vector<8x256xf32>
    %17 = arith.mulf %15, %16 : vector<8x256xf32>
    %18 = arith.addf %12, %17 : vector<8x256xf32>
    %19 = vector.extract_strided_slice %0 {offsets = [0, 3], sizes = [8, 1], strides = [1, 1]} : vector<8x4xf32> to vector<8x1xf32>
    %20 = vector.extract_strided_slice %1 {offsets = [3, 0], sizes = [1, 256], strides = [1, 1]} : vector<4x256xf32> to vector<1x256xf32>
    %21 = vector.broadcast %19 : vector<8x1xf32> to vector<8x256xf32>
    %22 = vector.broadcast %20 : vector<1x256xf32> to vector<8x256xf32>
    %23 = arith.mulf %21, %22 : vector<8x256xf32>
    %24 = arith.addf %18, %23 : vector<8x256xf32>
    %c0_3 = arith.constant 0 : index
    %c0_4 = arith.constant 0 : index
    %25 = vector.load %arg3[%c0_3, %c0_4] : memref<1x256xf32, #tpu.memory_space<vmem>>, vector<1x256xf32>
    %26 = vector.broadcast %25 : vector<1x256xf32> to vector<8x256xf32>
    %27 = arith.addf %24, %26 : vector<8x256xf32>
    %28 = math.tanh %27 : vector<8x256xf32>
    %c0_5 = arith.constant 0 : index
    %c0_6 = arith.constant 0 : index
    %29 = vector.load %arg4[%c0_5, %c0_6] : memref<256x256xbf16, #tpu.memory_space<vmem>>, vector<256x256xbf16>
    %30 = arith.truncf %28 : vector<8x256xf32> to vector<8x256xbf16>
    %cst = arith.constant dense<0.000000e+00> : vector<8x256xf32>
    %31 = tpu.matmul %30, %29, %cst {dimension_numbers = #tpu.dot_dimension_numbers<[1], [0], [0], [1], [0, 0, 1, 1], [], []>} : vector<8x256xbf16>, vector<256x256xbf16>, vector<8x256xf32> -> vector<8x256xf32>
    %c0_7 = arith.constant 0 : index
    %c0_8 = arith.constant 0 : index
    %32 = vector.load %arg5[%c0_7, %c0_8] : memref<1x256xf32, #tpu.memory_space<vmem>>, vector<1x256xf32>
    %33 = vector.broadcast %32 : vector<1x256xf32> to vector<8x256xf32>
    %34 = arith.addf %31, %33 : vector<8x256xf32>
    %35 = math.tanh %34 : vector<8x256xf32>
    %c0_9 = arith.constant 0 : index
    %c0_10 = arith.constant 0 : index
    %36 = vector.load %arg6[%c0_9, %c0_10] : memref<256x256xbf16, #tpu.memory_space<vmem>>, vector<256x256xbf16>
    %37 = arith.truncf %35 : vector<8x256xf32> to vector<8x256xbf16>
    %cst_11 = arith.constant dense<0.000000e+00> : vector<8x256xf32>
    %38 = tpu.matmul %37, %36, %cst_11 {dimension_numbers = #tpu.dot_dimension_numbers<[1], [0], [0], [1], [0, 0, 1, 1], [], []>} : vector<8x256xbf16>, vector<256x256xbf16>, vector<8x256xf32> -> vector<8x256xf32>
    %c0_12 = arith.constant 0 : index
    %c0_13 = arith.constant 0 : index
    %39 = vector.load %arg7[%c0_12, %c0_13] : memref<1x256xf32, #tpu.memory_space<vmem>>, vector<1x256xf32>
    %40 = vector.broadcast %39 : vector<1x256xf32> to vector<8x256xf32>
    %41 = arith.addf %38, %40 : vector<8x256xf32>
    %42 = arith.addf %41, %28 : vector<8x256xf32>
    %43 = math.tanh %42 : vector<8x256xf32>
    %c0_14 = arith.constant 0 : index
    %c0_15 = arith.constant 0 : index
    %44 = vector.load %arg8[%c0_14, %c0_15] : memref<256x256xbf16, #tpu.memory_space<vmem>>, vector<256x256xbf16>
    %45 = arith.truncf %43 : vector<8x256xf32> to vector<8x256xbf16>
    %cst_16 = arith.constant dense<0.000000e+00> : vector<8x256xf32>
    %46 = tpu.matmul %45, %44, %cst_16 {dimension_numbers = #tpu.dot_dimension_numbers<[1], [0], [0], [1], [0, 0, 1, 1], [], []>} : vector<8x256xbf16>, vector<256x256xbf16>, vector<8x256xf32> -> vector<8x256xf32>
    %c0_17 = arith.constant 0 : index
    %c0_18 = arith.constant 0 : index
    %47 = vector.load %arg9[%c0_17, %c0_18] : memref<1x256xf32, #tpu.memory_space<vmem>>, vector<1x256xf32>
    %48 = vector.broadcast %47 : vector<1x256xf32> to vector<8x256xf32>
    %49 = arith.addf %46, %48 : vector<8x256xf32>
    %50 = math.tanh %49 : vector<8x256xf32>
    %c0_19 = arith.constant 0 : index
    %c0_20 = arith.constant 0 : index
    %51 = vector.load %arg10[%c0_19, %c0_20] : memref<256x256xbf16, #tpu.memory_space<vmem>>, vector<256x256xbf16>
    %52 = arith.truncf %50 : vector<8x256xf32> to vector<8x256xbf16>
    %cst_21 = arith.constant dense<0.000000e+00> : vector<8x256xf32>
    %53 = tpu.matmul %52, %51, %cst_21 {dimension_numbers = #tpu.dot_dimension_numbers<[1], [0], [0], [1], [0, 0, 1, 1], [], []>} : vector<8x256xbf16>, vector<256x256xbf16>, vector<8x256xf32> -> vector<8x256xf32>
    %c0_22 = arith.constant 0 : index
    %c0_23 = arith.constant 0 : index
    %54 = vector.load %arg11[%c0_22, %c0_23] : memref<1x256xf32, #tpu.memory_space<vmem>>, vector<1x256xf32>
    %55 = vector.broadcast %54 : vector<1x256xf32> to vector<8x256xf32>
    %56 = arith.addf %53, %55 : vector<8x256xf32>
    %57 = arith.addf %56, %43 : vector<8x256xf32>
    %58 = math.tanh %57 : vector<8x256xf32>
    %c0_24 = arith.constant 0 : index
    %c0_25 = arith.constant 0 : index
    %59 = vector.load %arg12[%c0_24, %c0_25] : memref<256x128xbf16, #tpu.memory_space<vmem>>, vector<256x128xbf16>
    %60 = arith.truncf %58 : vector<8x256xf32> to vector<8x256xbf16>
    %cst_26 = arith.constant dense<0.000000e+00> : vector<8x128xf32>
    %61 = tpu.matmul %60, %59, %cst_26 {dimension_numbers = #tpu.dot_dimension_numbers<[1], [0], [0], [1], [0, 0, 1, 1], [], []>} : vector<8x256xbf16>, vector<256x128xbf16>, vector<8x128xf32> -> vector<8x128xf32>
    %c0_27 = arith.constant 0 : index
    %c0_28 = arith.constant 0 : index
    %62 = vector.load %arg13[%c0_27, %c0_28] : memref<1x128xf32, #tpu.memory_space<vmem>>, vector<1x128xf32>
    %63 = vector.broadcast %62 : vector<1x128xf32> to vector<8x128xf32>
    %64 = arith.addf %61, %63 : vector<8x128xf32>
    %65 = math.tanh %64 : vector<8x128xf32>
    %c0_29 = arith.constant 0 : index
    %c0_30 = arith.constant 0 : index
    %66 = vector.load %arg14[%c0_29, %c0_30] : memref<8x128xf32, #tpu.memory_space<vmem>>, vector<8x128xf32>
    tpu.vector_store %arg14[%c0_29, %c0_30], %65 {strides = array<i32>} : memref<8x128xf32, #tpu.memory_space<vmem>>, vector<8x128xf32>,
    return
  }
  func.func @transform_0(%arg0: i32) -> (i32, i32) {
    %c0_i32 = arith.constant 0 : i32
    %c0_i32_0 = arith.constant 0 : i32
    return %arg0, %c0_i32 : i32, i32
  }
  func.func @transform_1(%arg0: i32) -> (i32, i32) {
    %c0_i32 = arith.constant 0 : i32
    %c0_i32_0 = arith.constant 0 : i32
    %c0_i32_1 = arith.constant 0 : i32
    return %c0_i32, %c0_i32_0 : i32, i32
  }
  func.func @transform_2(%arg0: i32) -> (i32, i32) {
    %c0_i32 = arith.constant 0 : i32
    %c0_i32_0 = arith.constant 0 : i32
    %c0_i32_1 = arith.constant 0 : i32
    return %c0_i32, %c0_i32_0 : i32, i32
  }
  func.func @transform_3(%arg0: i32) -> (i32, i32) {
    %c0_i32 = arith.constant 0 : i32
    %c0_i32_0 = arith.constant 0 : i32
    %c0_i32_1 = arith.constant 0 : i32
    return %c0_i32, %c0_i32_0 : i32, i32
  }
  func.func @transform_4(%arg0: i32) -> (i32, i32) {
    %c0_i32 = arith.constant 0 : i32
    %c0_i32_0 = arith.constant 0 : i32
    %c0_i32_1 = arith.constant 0 : i32
    return %c0_i32, %c0_i32_0 : i32, i32
  }
  func.func @transform_5(%arg0: i32) -> (i32, i32) {
    %c0_i32 = arith.constant 0 : i32
    %c0_i32_0 = arith.constant 0 : i32
    %c0_i32_1 = arith.constant 0 : i32
    return %c0_i32, %c0_i32_0 : i32, i32
  }
  func.func @transform_6(%arg0: i32) -> (i32, i32) {
    %c0_i32 = arith.constant 0 : i32
    %c0_i32_0 = arith.constant 0 : i32
    %c0_i32_1 = arith.constant 0 : i32
    return %c0_i32, %c0_i32_0 : i32, i32
  }
  func.func @transform_7(%arg0: i32) -> (i32, i32) {
    %c0_i32 = arith.constant 0 : i32
    %c0_i32_0 = arith.constant 0 : i32
    %c0_i32_1 = arith.constant 0 : i32
    return %c0_i32, %c0_i32_0 : i32, i32
  }
  func.func @transform_8(%arg0: i32) -> (i32, i32) {
    %c0_i32 = arith.constant 0 : i32
    %c0_i32_0 = arith.constant 0 : i32
    %c0_i32_1 = arith.constant 0 : i32
    return %c0_i32, %c0_i32_0 : i32, i32
  }
  func.func @transform_9(%arg0: i32) -> (i32, i32) {
    %c0_i32 = arith.constant 0 : i32
    %c0_i32_0 = arith.constant 0 : i32
    %c0_i32_1 = arith.constant 0 : i32
    return %c0_i32, %c0_i32_0 : i32, i32
  }
  func.func @transform_10(%arg0: i32) -> (i32, i32) {
    %c0_i32 = arith.constant 0 : i32
    %c0_i32_0 = arith.constant 0 : i32
    %c0_i32_1 = arith.constant 0 : i32
    return %c0_i32, %c0_i32_0 : i32, i32
  }
  func.func @transform_11(%arg0: i32) -> (i32, i32) {
    %c0_i32 = arith.constant 0 : i32
    %c0_i32_0 = arith.constant 0 : i32
    %c0_i32_1 = arith.constant 0 : i32
    return %c0_i32, %c0_i32_0 : i32, i32
  }
  func.func @transform_12(%arg0: i32) -> (i32, i32) {
    %c0_i32 = arith.constant 0 : i32
    %c0_i32_0 = arith.constant 0 : i32
    %c0_i32_1 = arith.constant 0 : i32
    return %c0_i32, %c0_i32_0 : i32, i32
  }
  func.func @transform_13(%arg0: i32) -> (i32, i32) {
    %c0_i32 = arith.constant 0 : i32
    %c0_i32_0 = arith.constant 0 : i32
    return %arg0, %c0_i32 : i32, i32
  }
}

module attributes {stable_mosaic.version = 11 : i64} {
  func.func @_resnet_kernel(%arg0: i32, %arg1: memref<8x4xf32, #tpu.memory_space<vmem>>, %arg2: memref<4x256xf32, #tpu.memory_space<vmem>>, %arg3: memref<1x256xf32, #tpu.memory_space<vmem>>, %arg4: memref<256x256xbf16, #tpu.memory_space<vmem>>, %arg5: memref<1x256xf32, #tpu.memory_space<vmem>>, %arg6: memref<256x256xbf16, #tpu.memory_space<vmem>>, %arg7: memref<1x256xf32, #tpu.memory_space<vmem>>, %arg8: memref<256x256xbf16, #tpu.memory_space<vmem>>, %arg9: memref<1x256xf32, #tpu.memory_space<vmem>>, %arg10: memref<256x256xbf16, #tpu.memory_space<vmem>>, %arg11: memref<1x256xf32, #tpu.memory_space<vmem>>, %arg12: memref<256x128xbf16, #tpu.memory_space<vmem>>, %arg13: memref<1x128xf32, #tpu.memory_space<vmem>>, %arg14: memref<8x128xf32, #tpu.memory_space<vmem>>) attributes {dimension_semantics = [#tpu.dimension_semantics<parallel>], iteration_bounds = array<i64: 1>, scalar_prefetch = 0 : i64, scratch_operands = 0 : i64, tpu.core_type = #tpu.core_type<tc>, window_params = [{transform_indices = @transform_0, window_bounds = array<i64: 8, 4>}, {pipeline_mode = #tpu.pipeline_mode<synchronous>, transform_indices = @transform_1, window_bounds = array<i64: 4, 256>}, {pipeline_mode = #tpu.pipeline_mode<synchronous>, transform_indices = @transform_2, window_bounds = array<i64: 1, 256>}, {pipeline_mode = #tpu.pipeline_mode<synchronous>, transform_indices = @transform_3, window_bounds = array<i64: 256, 256>}, {pipeline_mode = #tpu.pipeline_mode<synchronous>, transform_indices = @transform_4, window_bounds = array<i64: 1, 256>}, {pipeline_mode = #tpu.pipeline_mode<synchronous>, transform_indices = @transform_5, window_bounds = array<i64: 256, 256>}, {pipeline_mode = #tpu.pipeline_mode<synchronous>, transform_indices = @transform_6, window_bounds = array<i64: 1, 256>}, {pipeline_mode = #tpu.pipeline_mode<synchronous>, transform_indices = @transform_7, window_bounds = array<i64: 256, 256>}, {pipeline_mode = #tpu.pipeline_mode<synchronous>, transform_indices = @transform_8, window_bounds = array<i64: 1, 256>}, {pipeline_mode = #tpu.pipeline_mode<synchronous>, transform_indices = @transform_9, window_bounds = array<i64: 256, 256>}, {pipeline_mode = #tpu.pipeline_mode<synchronous>, transform_indices = @transform_10, window_bounds = array<i64: 1, 256>}, {pipeline_mode = #tpu.pipeline_mode<synchronous>, transform_indices = @transform_11, window_bounds = array<i64: 256, 128>}, {pipeline_mode = #tpu.pipeline_mode<synchronous>, transform_indices = @transform_12, window_bounds = array<i64: 1, 128>}, {transform_indices = @transform_13, window_bounds = array<i64: 8, 128>}]} {
    %c0 = arith.constant 0 : index
    %c0_0 = arith.constant 0 : index
    %0 = vector.load %arg1[%c0, %c0_0] : memref<8x4xf32, #tpu.memory_space<vmem>>, vector<8x4xf32>
    %c0_1 = arith.constant 0 : index
    %c0_2 = arith.constant 0 : index
    %1 = vector.load %arg2[%c0_1, %c0_2] : memref<4x256xf32, #tpu.memory_space<vmem>>, vector<4x256xf32>
    %2 = vector.extract_strided_slice %0 {offsets = [0, 0], sizes = [8, 1], strides = [1, 1]} : vector<8x4xf32> to vector<8x1xf32>
    %3 = vector.extract_strided_slice %1 {offsets = [0, 0], sizes = [1, 256], strides = [1, 1]} : vector<4x256xf32> to vector<1x256xf32>
    %4 = vector.broadcast %2 : vector<8x1xf32> to vector<8x256xf32>
    %5 = vector.broadcast %3 : vector<1x256xf32> to vector<8x256xf32>
    %6 = arith.mulf %4, %5 : vector<8x256xf32>
    %7 = vector.extract_strided_slice %0 {offsets = [0, 1], sizes = [8, 1], strides = [1, 1]} : vector<8x4xf32> to vector<8x1xf32>
    %8 = vector.extract_strided_slice %1 {offsets = [1, 0], sizes = [1, 256], strides = [1, 1]} : vector<4x256xf32> to vector<1x256xf32>
    %9 = vector.broadcast %7 : vector<8x1xf32> to vector<8x256xf32>
    %10 = vector.broadcast %8 : vector<1x256xf32> to vector<8x256xf32>
    %11 = arith.mulf %9, %10 : vector<8x256xf32>
    %12 = arith.addf %6, %11 : vector<8x256xf32>
    %13 = vector.extract_strided_slice %0 {offsets = [0, 2], sizes = [8, 1], strides = [1, 1]} : vector<8x4xf32> to vector<8x1xf32>
    %14 = vector.extract_strided_slice %1 {offsets = [2, 0], sizes = [1, 256], strides = [1, 1]} : vector<4x256xf32> to vector<1x256xf32>
    %15 = vector.broadcast %13 : vector<8x1xf32> to vector<8x256xf32>
    %16 = vector.broadcast %14 : vector<1x256xf32> to vector<8x256xf32>
    %17 = arith.mulf %15, %16 : vector<8x256xf32>
    %18 = arith.addf %12, %17 : vector<8x256xf32>
    %19 = vector.extract_strided_slice %0 {offsets = [0, 3], sizes = [8, 1], strides = [1, 1]} : vector<8x4xf32> to vector<8x1xf32>
    %20 = vector.extract_strided_slice %1 {offsets = [3, 0], sizes = [1, 256], strides = [1, 1]} : vector<4x256xf32> to vector<1x256xf32>
    %21 = vector.broadcast %19 : vector<8x1xf32> to vector<8x256xf32>
    %22 = vector.broadcast %20 : vector<1x256xf32> to vector<8x256xf32>
    %23 = arith.mulf %21, %22 : vector<8x256xf32>
    %24 = arith.addf %18, %23 : vector<8x256xf32>
    %c0_3 = arith.constant 0 : index
    %c0_4 = arith.constant 0 : index
    %25 = vector.load %arg3[%c0_3, %c0_4] : memref<1x256xf32, #tpu.memory_space<vmem>>, vector<1x256xf32>
    %26 = vector.broadcast %25 : vector<1x256xf32> to vector<8x256xf32>
    %27 = arith.addf %24, %26 : vector<8x256xf32>
    %28 = math.tanh %27 : vector<8x256xf32>
    %c0_5 = arith.constant 0 : index
    %c0_6 = arith.constant 0 : index
    %29 = vector.load %arg4[%c0_5, %c0_6] : memref<256x256xbf16, #tpu.memory_space<vmem>>, vector<256x256xbf16>
    %30 = arith.truncf %28 : vector<8x256xf32> to vector<8x256xbf16>
    %cst = arith.constant dense<0.000000e+00> : vector<8x256xf32>
    %31 = tpu.matmul %30, %29, %cst {dimension_numbers = #tpu.dot_dimension_numbers<[1], [0], [0], [1], [0, 0, 1, 1], [], []>} : vector<8x256xbf16>, vector<256x256xbf16>, vector<8x256xf32> -> vector<8x256xf32>
    %c0_7 = arith.constant 0 : index
    %c0_8 = arith.constant 0 : index
    %32 = vector.load %arg5[%c0_7, %c0_8] : memref<1x256xf32, #tpu.memory_space<vmem>>, vector<1x256xf32>
    %33 = vector.broadcast %32 : vector<1x256xf32> to vector<8x256xf32>
    %34 = arith.addf %31, %33 : vector<8x256xf32>
    %35 = math.tanh %34 : vector<8x256xf32>
    %c0_9 = arith.constant 0 : index
    %c0_10 = arith.constant 0 : index
    %36 = vector.load %arg6[%c0_9, %c0_10] : memref<256x256xbf16, #tpu.memory_space<vmem>>, vector<256x256xbf16>
    %37 = arith.truncf %35 : vector<8x256xf32> to vector<8x256xbf16>
    %cst_11 = arith.constant dense<0.000000e+00> : vector<8x256xf32>
    %38 = tpu.matmul %37, %36, %cst_11 {dimension_numbers = #tpu.dot_dimension_numbers<[1], [0], [0], [1], [0, 0, 1, 1], [], []>} : vector<8x256xbf16>, vector<256x256xbf16>, vector<8x256xf32> -> vector<8x256xf32>
    %c0_12 = arith.constant 0 : index
    %c0_13 = arith.constant 0 : index
    %39 = vector.load %arg7[%c0_12, %c0_13] : memref<1x256xf32, #tpu.memory_space<vmem>>, vector<1x256xf32>
    %40 = vector.broadcast %39 : vector<1x256xf32> to vector<8x256xf32>
    %41 = arith.addf %38, %40 : vector<8x256xf32>
    %42 = arith.addf %41, %28 : vector<8x256xf32>
    %43 = math.tanh %42 : vector<8x256xf32>
    %c0_14 = arith.constant 0 : index
    %c0_15 = arith.constant 0 : index
    %44 = vector.load %arg8[%c0_14, %c0_15] : memref<256x256xbf16, #tpu.memory_space<vmem>>, vector<256x256xbf16>
    %45 = arith.truncf %43 : vector<8x256xf32> to vector<8x256xbf16>
    %cst_16 = arith.constant dense<0.000000e+00> : vector<8x256xf32>
    %46 = tpu.matmul %45, %44, %cst_16 {dimension_numbers = #tpu.dot_dimension_numbers<[1], [0], [0], [1], [0, 0, 1, 1], [], []>} : vector<8x256xbf16>, vector<256x256xbf16>, vector<8x256xf32> -> vector<8x256xf32>
    %c0_17 = arith.constant 0 : index
    %c0_18 = arith.constant 0 : index
    %47 = vector.load %arg9[%c0_17, %c0_18] : memref<1x256xf32, #tpu.memory_space<vmem>>, vector<1x256xf32>
    %48 = vector.broadcast %47 : vector<1x256xf32> to vector<8x256xf32>
    %49 = arith.addf %46, %48 : vector<8x256xf32>
    %50 = math.tanh %49 : vector<8x256xf32>
    %c0_19 = arith.constant 0 : index
    %c0_20 = arith.constant 0 : index
    %51 = vector.load %arg10[%c0_19, %c0_20] : memref<256x256xbf16, #tpu.memory_space<vmem>>, vector<256x256xbf16>
    %52 = arith.truncf %50 : vector<8x256xf32> to vector<8x256xbf16>
    %cst_21 = arith.constant dense<0.000000e+00> : vector<8x256xf32>
    %53 = tpu.matmul %52, %51, %cst_21 {dimension_numbers = #tpu.dot_dimension_numbers<[1], [0], [0], [1], [0, 0, 1, 1], [], []>} : vector<8x256xbf16>, vector<256x256xbf16>, vector<8x256xf32> -> vector<8x256xf32>
    %c0_22 = arith.constant 0 : index
    %c0_23 = arith.constant 0 : index
    %54 = vector.load %arg11[%c0_22, %c0_23] : memref<1x256xf32, #tpu.memory_space<vmem>>, vector<1x256xf32>
    %55 = vector.broadcast %54 : vector<1x256xf32> to vector<8x256xf32>
    %56 = arith.addf %53, %55 : vector<8x256xf32>
    %57 = arith.addf %56, %43 : vector<8x256xf32>
    %58 = math.tanh %57 : vector<8x256xf32>
    %c0_24 = arith.constant 0 : index
    %c0_25 = arith.constant 0 : index
    %59 = vector.load %arg12[%c0_24, %c0_25] : memref<256x128xbf16, #tpu.memory_space<vmem>>, vector<256x128xbf16>
    %60 = arith.truncf %58 : vector<8x256xf32> to vector<8x256xbf16>
    %cst_26 = arith.constant dense<0.000000e+00> : vector<8x128xf32>
    %61 = tpu.matmul %60, %59, %cst_26 {dimension_numbers = #tpu.dot_dimension_numbers<[1], [0], [0], [1], [0, 0, 1, 1], [], []>} : vector<8x256xbf16>, vector<256x128xbf16>, vector<8x128xf32> -> vector<8x128xf32>
    %c0_27 = arith.constant 0 : index
    %c0_28 = arith.constant 0 : index
    %62 = vector.load %arg13[%c0_27, %c0_28] : memref<1x128xf32, #tpu.memory_space<vmem>>, vector<1x128xf32>
    %63 = vector.broadcast %62 : vector<1x128xf32> to vector<8x128xf32>
    %64 = arith.addf %61, %63 : vector<8x128xf32>
    %65 = math.tanh %64 : vector<8x128xf32>
    %c0_29 = arith.constant 0 : index
    %c0_30 = arith.constant 0 : index
    %66 = vector.load %arg14[%c0_29, %c0_30] : memref<8x128xf32, #tpu.memory_space<vmem>>, vector<8x128xf32>
    tpu.vector_store %arg14[%c0_29, %c0_30], %65 {strides = array<i32>} : memref<8x128xf32, #tpu.memory_space<vmem>>, vector<8x128xf32>,
    return
  }
  func.func @transform_0(%arg0: i32) -> (i32, i32) {
    %c0_i32 = arith.constant 0 : i32
    %c0_i32_0 = arith.constant 0 : i32
    return %arg0, %c0_i32 : i32, i32
  }
  func.func @transform_1(%arg0: i32) -> (i32, i32) {
    %c0_i32 = arith.constant 0 : i32
    %c0_i32_0 = arith.constant 0 : i32
    %c0_i32_1 = arith.constant 0 : i32
    return %c0_i32, %c0_i32_0 : i32, i32
  }
  func.func @transform_2(%arg0: i32) -> (i32, i32) {
    %c0_i32 = arith.constant 0 : i32
    %c0_i32_0 = arith.constant 0 : i32
    %c0_i32_1 = arith.constant 0 : i32
    return %c0_i32, %c0_i32_0 : i32, i32
  }
  func.func @transform_3(%arg0: i32) -> (i32, i32) {
    %c0_i32 = arith.constant 0 : i32
    %c0_i32_0 = arith.constant 0 : i32
    %c0_i32_1 = arith.constant 0 : i32
    return %c0_i32, %c0_i32_0 : i32, i32
  }
  func.func @transform_4(%arg0: i32) -> (i32, i32) {
    %c0_i32 = arith.constant 0 : i32
    %c0_i32_0 = arith.constant 0 : i32
    %c0_i32_1 = arith.constant 0 : i32
    return %c0_i32, %c0_i32_0 : i32, i32
  }
  func.func @transform_5(%arg0: i32) -> (i32, i32) {
    %c0_i32 = arith.constant 0 : i32
    %c0_i32_0 = arith.constant 0 : i32
    %c0_i32_1 = arith.constant 0 : i32
    return %c0_i32, %c0_i32_0 : i32, i32
  }
  func.func @transform_6(%arg0: i32) -> (i32, i32) {
    %c0_i32 = arith.constant 0 : i32
    %c0_i32_0 = arith.constant 0 : i32
    %c0_i32_1 = arith.constant 0 : i32
    return %c0_i32, %c0_i32_0 : i32, i32
  }
  func.func @transform_7(%arg0: i32) -> (i32, i32) {
    %c0_i32 = arith.constant 0 : i32
    %c0_i32_0 = arith.constant 0 : i32
    %c0_i32_1 = arith.constant 0 : i32
    return %c0_i32, %c0_i32_0 : i32, i32
  }
  func.func @transform_8(%arg0: i32) -> (i32, i32) {
    %c0_i32 = arith.constant 0 : i32
    %c0_i32_0 = arith.constant 0 : i32
    %c0_i32_1 = arith.constant 0 : i32
    return %c0_i32, %c0_i32_0 : i32, i32
  }
  func.func @transform_9(%arg0: i32) -> (i32, i32) {
    %c0_i32 = arith.constant 0 : i32
    %c0_i32_0 = arith.constant 0 : i32
    %c0_i32_1 = arith.constant 0 : i32
    return %c0_i32, %c0_i32_0 : i32, i32
  }
  func.func @transform_10(%arg0: i32) -> (i32, i32) {
    %c0_i32 = arith.constant 0 : i32
    %c0_i32_0 = arith.constant 0 : i32
    %c0_i32_1 = arith.constant 0 : i32
    return %c0_i32, %c0_i32_0 : i32, i32
  }
  func.func @transform_11(%arg0: i32) -> (i32, i32) {
    %c0_i32 = arith.constant 0 : i32
    %c0_i32_0 = arith.constant 0 : i32
    %c0_i32_1 = arith.constant 0 : i32
    return %c0_i32, %c0_i32_0 : i32, i32
  }
  func.func @transform_12(%arg0: i32) -> (i32, i32) {
    %c0_i32 = arith.constant 0 : i32
    %c0_i32_0 = arith.constant 0 : i32
    %c0_i32_1 = arith.constant 0 : i32
    return %c0_i32, %c0_i32_0 : i32, i32
  }
  func.func @transform_13(%arg0: i32) -> (i32, i32) {
    %c0_i32 = arith.constant 0 : i32
    %c0_i32_0 = arith.constant 0 : i32
    return %arg0, %c0_i32 : i32, i32
  }
}

</mosaic_0001>

<llo_original>
// kernel: tpu_custom_call.1
$region0: #{tpu_custom_call.1}
  #allocation0 [shape = 'u32[]', space=smem, size = 0x4, offset = 0x4, fixed_abs, tag = 'smem constant byte address 0x4 - core index']
  #allocation1 [shape = 'u32[144,128]{1,0:T(1,128)}', space=vmem, size = 0x12000, scoped, tag = 'internal scratch']
  %s0 = inlined_call_operand.vmem [shape: f32[8,4], index: 0, kind: input, shape index: {}]
  %s1 = inlined_call_operand.vmem [shape: f32[4,256], index: 1, kind: input, shape index: {}]
  %s2 = inlined_call_operand.vmem [shape: f32[1,256], index: 2, kind: input, shape index: {}]
  %s3 = inlined_call_operand.hbm [shape: bf16[256,256], index: 3, kind: input, shape index: {}]
  %s4 = inlined_call_operand.vmem [shape: f32[1,256], index: 4, kind: input, shape index: {}]
  %s5 = inlined_call_operand.hbm [shape: bf16[256,256], index: 5, kind: input, shape index: {}]
  %s6 = inlined_call_operand.vmem [shape: f32[1,256], index: 6, kind: input, shape index: {}]
  %s7 = inlined_call_operand.hbm [shape: bf16[256,256], index: 7, kind: input, shape index: {}]
  %s8 = inlined_call_operand.vmem [shape: f32[1,256], index: 8, kind: input, shape index: {}]
  %s9 = inlined_call_operand.hbm [shape: bf16[256,256], index: 9, kind: input, shape index: {}]
  %s10 = inlined_call_operand.vmem [shape: f32[1,256], index: 10, kind: input, shape index: {}]
  %s11 = inlined_call_operand.hbm [shape: bf16[256,128], index: 11, kind: input, shape index: {}]
  %s12 = inlined_call_operand.vmem [shape: f32[1,128], index: 12, kind: input, shape index: {}]
  %s13 = inlined_call_operand.hbm [shape: f32[8,128], index: 13, kind: output, shape index: {}]
  %s14 = sld [smem:[#allocation0]]
  $region82: #{tpu_custom_call.1} parent=0
    _
  %s16 = ssub.s32 1, %s14
  %s17 = scalar_select 0, %s16, %s14
  $region1: #{tpu_custom_call.1} parent=0
    #allocation2 [shape = 'u8[131072]{0}', space=vmem, size = 0x20000, scoped, tag = 'input window, operand 3, single buffered']
    #allocation3 [shape = 's32[1]{0}', space=sflag, size = 0x4, scoped, tag = 'scoped memory for tpu_custom_call.1']
    #allocation4 [shape = 's32[1]{0}', space=sflag, size = 0x4, scoped, tag = 'scoped memory for tpu_custom_call.1']
    #allocation5 [shape = 'u8[131072]{0}', space=vmem, size = 0x20000, scoped, tag = 'input window, operand 5, single buffered']
    #allocation6 [shape = 's32[1]{0}', space=sflag, size = 0x4, scoped, tag = 'scoped memory for tpu_custom_call.1']
    #allocation7 [shape = 'u8[131072]{0}', space=vmem, size = 0x20000, scoped, tag = 'input window, operand 7, single buffered']
    #allocation8 [shape = 'u8[131072]{0}', space=vmem, size = 0x20000, scoped, tag = 'input window, operand 9, single buffered']
    #allocation9 [shape = 's32[1]{0}', space=sflag, size = 0x4, scoped, tag = 'scoped memory for tpu_custom_call.1']
    #allocation10 [shape = 'u8[65536]{0}', space=vmem, size = 0x10000, scoped, tag = 'input window, operand 11, single buffered']
    #allocation11 [shape = 'u8[4096]{0}', space=vmem, size = 0x1000, scoped, tag = 'output window, operand 0, single buffered']
    %18 = vsyncpa [#allocation3], 0
    %19 = vsyncpa [#allocation6], 0
    %20 = vsyncpa [#allocation9], 0
    %21 = vsyncpa [#allocation4], 0
    // Predicated region
    $region2: #{tpu_custom_call.1} parent=1 // pred_check
      _
    $region3: #{tpu_custom_call.1} parent=1 // pred_check_branch
      %23 = sbr.rel (0) target = $region5
    $region4: #{tpu_custom_call.1} parent=1 // pred_region
      _
    $region5: #{tpu_custom_call.1} parent=1 // pred_fallthru
      _
    // Predicated region
    $region6: #{tpu_custom_call.1} parent=1 // pred_check
      _
    $region7: #{tpu_custom_call.1} parent=1 // pred_check_branch
      %25 = sbr.rel (0) target = $region9
    $region8: #{tpu_custom_call.1} parent=1 // pred_region
      _
    $region9: #{tpu_custom_call.1} parent=1 // pred_fallthru
      _
    // Predicated region
    $region10: #{tpu_custom_call.1} parent=1 // pred_check
      _
    $region11: #{tpu_custom_call.1} parent=1 // pred_check_branch
      %27 = sbr.rel (0) target = $region13
    $region12: #{tpu_custom_call.1} parent=1 // pred_region
      _
    $region13: #{tpu_custom_call.1} parent=1 // pred_fallthru
      _
    // Predicated region
    $region14: #{tpu_custom_call.1} parent=1 // pred_check
      _
    $region15: #{tpu_custom_call.1} parent=1 // pred_check_branch
      %29 = sbr.rel (0) target = $region17
    $region16: #{tpu_custom_call.1} parent=1 // pred_region
      %s31 = ssub.s32 4096, 4096
      %32 = vsyncadd [#allocation3], %s31
      %s33 = sshll.u32 [#allocation2], 4
      %s34 = int_to_ptr.vmem [resolvable:$true] %s33
      %39 = dma.hbm_to_vmem [thread:$0]  %s3, 4096, %s34, [#allocation3], 128, 128, 8
    $region17: #{tpu_custom_call.1} parent=1 // pred_fallthru
      _
    // Predicated region
    $region18: #{tpu_custom_call.1} parent=1 // pred_check
      _
    $region19: #{tpu_custom_call.1} parent=1 // pred_check_branch
      %41 = sbr.rel (0) target = $region21
    $region20: #{tpu_custom_call.1} parent=1 // pred_region
      _
    $region21: #{tpu_custom_call.1} parent=1 // pred_fallthru
      _
    // Predicated region
    $region22: #{tpu_custom_call.1} parent=1 // pred_check
      _
    $region23: #{tpu_custom_call.1} parent=1 // pred_check_branch
      %43 = sbr.rel (0) target = $region25
    $region24: #{tpu_custom_call.1} parent=1 // pred_region
      %s45 = ssub.s32 4096, 4096
      %46 = vsyncadd [#allocation6], %s45
      %s47 = sshll.u32 [#allocation5], 4
      %s48 = int_to_ptr.vmem [resolvable:$true] %s47
      %53 = dma.hbm_to_vmem [thread:$0]  %s5, 4096, %s48, [#allocation6], 128, 128, 8
    $region25: #{tpu_custom_call.1} parent=1 // pred_fallthru
      _
    // Predicated region
    $region26: #{tpu_custom_call.1} parent=1 // pred_check
      _
    $region27: #{tpu_custom_call.1} parent=1 // pred_check_branch
      %55 = sbr.rel (0) target = $region29
    $region28: #{tpu_custom_call.1} parent=1 // pred_region
      _
    $region29: #{tpu_custom_call.1} parent=1 // pred_fallthru
      _
    // Predicated region
    $region30: #{tpu_custom_call.1} parent=1 // pred_check
      _
    $region31: #{tpu_custom_call.1} parent=1 // pred_check_branch
      %57 = sbr.rel (0) target = $region33
    $region32: #{tpu_custom_call.1} parent=1 // pred_region
      %s59 = ssub.s32 4096, 4096
      %60 = vsyncadd [#allocation6], %s59
      %s61 = sshll.u32 [#allocation7], 4
      %s62 = int_to_ptr.vmem [resolvable:$true] %s61
      %67 = dma.hbm_to_vmem [thread:$0]  %s7, 4096, %s62, [#allocation6], 128, 128, 8
    $region33: #{tpu_custom_call.1} parent=1 // pred_fallthru
      _
    // Predicated region
    $region34: #{tpu_custom_call.1} parent=1 // pred_check
      _
    $region35: #{tpu_custom_call.1} parent=1 // pred_check_branch
      %69 = sbr.rel (0) target = $region37
    $region36: #{tpu_custom_call.1} parent=1 // pred_region
      _
    $region37: #{tpu_custom_call.1} parent=1 // pred_fallthru
      _
    // Predicated region
    $region38: #{tpu_custom_call.1} parent=1 // pred_check
      _
    $region39: #{tpu_custom_call.1} parent=1 // pred_check_branch
      %71 = sbr.rel (0) target = $region41
    $region40: #{tpu_custom_call.1} parent=1 // pred_region
      %s73 = ssub.s32 4096, 4096
      %74 = vsyncadd [#allocation9], %s73
      %s75 = sshll.u32 [#allocation8], 4
      %s76 = int_to_ptr.vmem [resolvable:$true] %s75
      %81 = dma.hbm_to_vmem [thread:$0]  %s9, 4096, %s76, [#allocation9], 128, 128, 8
    $region41: #{tpu_custom_call.1} parent=1 // pred_fallthru
      _
    // Predicated region
    $region42: #{tpu_custom_call.1} parent=1 // pred_check
      _
    $region43: #{tpu_custom_call.1} parent=1 // pred_check_branch
      %83 = sbr.rel (0) target = $region45
    $region44: #{tpu_custom_call.1} parent=1 // pred_region
      _
    $region45: #{tpu_custom_call.1} parent=1 // pred_fallthru
      _
    // Predicated region
    $region46: #{tpu_custom_call.1} parent=1 // pred_check
      _
    $region47: #{tpu_custom_call.1} parent=1 // pred_check_branch
      %85 = sbr.rel (0) target = $region49
    $region48: #{tpu_custom_call.1} parent=1 // pred_region
      %s87 = ssub.s32 2048, 2048
      %88 = vsyncadd [#allocation9], %s87
      %s89 = sshll.u32 [#allocation10], 4
      %s90 = int_to_ptr.vmem [resolvable:$true] %s89
      %95 = dma.hbm_to_vmem [thread:$0]  %s11, 2048, %s90, [#allocation9], 64, 64, 4
    $region49: #{tpu_custom_call.1} parent=1 // pred_fallthru
      _
    // Predicated region
    $region50: #{tpu_custom_call.1} parent=1 // pred_check
      _
    $region51: #{tpu_custom_call.1} parent=1 // pred_check_branch
      %97 = sbr.rel (0) target = $region53
    $region52: #{tpu_custom_call.1} parent=1 // pred_region
      _
    $region53: #{tpu_custom_call.1} parent=1 // pred_fallthru
      _
    // Predicated region
    $region54: #{tpu_custom_call.1} parent=1 // pred_check
      _
    $region55: #{tpu_custom_call.1} parent=1 // pred_check_branch
      %99 = sbr.rel (0) target = $region57
    $region56: #{tpu_custom_call.1} parent=1 // pred_region
      %100 = dma.done [#allocation3], 4096
    $region57: #{tpu_custom_call.1} parent=1 // pred_fallthru
      _
    // Predicated region
    $region58: #{tpu_custom_call.1} parent=1 // pred_check
      _
    $region59: #{tpu_custom_call.1} parent=1 // pred_check_branch
      %102 = sbr.rel (0) target = $region61
    $region60: #{tpu_custom_call.1} parent=1 // pred_region
      %103 = dma.done [#allocation6], 4096
    $region61: #{tpu_custom_call.1} parent=1 // pred_fallthru
      _
    // Predicated region
    $region62: #{tpu_custom_call.1} parent=1 // pred_check
      _
    $region63: #{tpu_custom_call.1} parent=1 // pred_check_branch
      %105 = sbr.rel (0) target = $region65
    $region64: #{tpu_custom_call.1} parent=1 // pred_region
      %106 = dma.done [#allocation6], 4096
    $region65: #{tpu_custom_call.1} parent=1 // pred_fallthru
      _
    // Predicated region
    $region66: #{tpu_custom_call.1} parent=1 // pred_check
      _
    $region67: #{tpu_custom_call.1} parent=1 // pred_check_branch
      %108 = sbr.rel (0) target = $region69
    $region68: #{tpu_custom_call.1} parent=1 // pred_region
      %109 = dma.done [#allocation9], 4096
    $region69: #{tpu_custom_call.1} parent=1 // pred_fallthru
      _
    // Predicated region
    $region70: #{tpu_custom_call.1} parent=1 // pred_check
      _
    $region71: #{tpu_custom_call.1} parent=1 // pred_check_branch
      %111 = sbr.rel (0) target = $region73
    $region72: #{tpu_custom_call.1} parent=1 // pred_region
      %112 = dma.done [#allocation9], 2048
    $region73: #{tpu_custom_call.1} parent=1 // pred_fallthru
      _
    %v114 = vld [vmem:[%s0] sm:$0xff]
    %v115 = vld [vmem:[%s1] sm:$0xff]
    %117 = vset.pattern.permute.xlu0 0
    %118 = vperm.xlu0 %117, %v114
    %v119 = vpop.permute.xlu0 %118
    %v122 = vlaneseq
    %v123 = vshrl.u32 %v122, 7
    %v124 = vsub.s32 0, %v123
    %v125 = vrot.slane %v115, %v124
    %v126 = vlaneseq
    %v127 = vshrl.u32 %v126, 7
    %v128 = vsub.s32 4, %v127
    %v129 = vrot.slane %v115, %v128
    %v132 = vlaneseq
    %v133 = vshrl.u32 %v132, 7
    %v134 = vsub.s32 0, %v133
    %v135 = vrot.slane %v125, %v134
    %v136 = vlaneseq
    %v137 = vshrl.u32 %v136, 7
    %v138 = vsub.s32 0, %v137
    %v139 = vrot.slane %v129, %v138
    %v140 = vmul.f32 %v119, %v135
    %v141 = vmul.f32 %v119, %v139
    %142 = vset.pattern.permute.xlu0 1
    %143 = vperm.xlu0 %142, %v114
    %v144 = vpop.permute.xlu0 %143
    %v146 = vlaneseq
    %v147 = vshrl.u32 %v146, 7
    %v148 = vsub.s32 1, %v147
    %v149 = vrot.slane %v115, %v148
    %v150 = vlaneseq
    %v151 = vshrl.u32 %v150, 7
    %v152 = vsub.s32 5, %v151
    %v153 = vrot.slane %v115, %v152
    %v156 = vlaneseq
    %v157 = vshrl.u32 %v156, 7
    %v158 = vsub.s32 1, %v157
    %v159 = vrot.slane %v149, %v158
    %v160 = vlaneseq
    %v161 = vshrl.u32 %v160, 7
    %v162 = vsub.s32 1, %v161
    %v163 = vrot.slane %v153, %v162
    %v164 = vmul.f32 %v144, %v159
    %v165 = vmul.f32 %v144, %v163
    %v166 = vadd.f32 %v140, %v164
    %v167 = vadd.f32 %v141, %v165
    %168 = vset.pattern.permute.xlu0 2
    %169 = vperm.xlu0 %168, %v114
    %v170 = vpop.permute.xlu0 %169
    %v172 = vlaneseq
    %v173 = vshrl.u32 %v172, 7
    %v174 = vsub.s32 2, %v173
    %v175 = vrot.slane %v115, %v174
    %v176 = vlaneseq
    %v177 = vshrl.u32 %v176, 7
    %v178 = vsub.s32 6, %v177
    %v179 = vrot.slane %v115, %v178
    %v182 = vlaneseq
    %v183 = vshrl.u32 %v182, 7
    %v184 = vsub.s32 2, %v183
    %v185 = vrot.slane %v175, %v184
    %v186 = vlaneseq
    %v187 = vshrl.u32 %v186, 7
    %v188 = vsub.s32 2, %v187
    %v189 = vrot.slane %v179, %v188
    %v190 = vmul.f32 %v170, %v185
    %v191 = vmul.f32 %v170, %v189
    %v192 = vadd.f32 %v166, %v190
    %v193 = vadd.f32 %v167, %v191
    %194 = vset.pattern.permute.xlu0 3
    %195 = vperm.xlu0 %194, %v114
    %v196 = vpop.permute.xlu0 %195
    %v198 = vlaneseq
    %v199 = vshrl.u32 %v198, 7
    %v200 = vsub.s32 3, %v199
    %v201 = vrot.slane %v115, %v200
    %v202 = vlaneseq
    %v203 = vshrl.u32 %v202, 7
    %v204 = vsub.s32 7, %v203
    %v205 = vrot.slane %v115, %v204
    %v208 = vlaneseq
    %v209 = vshrl.u32 %v208, 7
    %v210 = vsub.s32 3, %v209
    %v211 = vrot.slane %v201, %v210
    %v212 = vlaneseq
    %v213 = vshrl.u32 %v212, 7
    %v214 = vsub.s32 3, %v213
    %v215 = vrot.slane %v205, %v214
    %v216 = vmul.f32 %v196, %v211
    %v217 = vmul.f32 %v196, %v215
    %v218 = vadd.f32 %v192, %v216
    %v219 = vadd.f32 %v193, %v217
    %v220 = vld [vmem:[%s2] sm:$0x3]
    %v222 = vlaneseq
    %v223 = vshrl.u32 %v222, 7
    %v224 = vsub.s32 0, %v223
    %v225 = vrot.slane %v220, %v224
    %v226 = vlaneseq
    %v227 = vshrl.u32 %v226, 7
    %v228 = vsub.s32 1, %v227
    %v229 = vrot.slane %v220, %v228
    %v232 = vadd.f32 %v218, %v225
    %v233 = vadd.f32 %v219, %v229
    %v234 = vtanh.pop %v232
    %v235 = vtanh.pop %v233
    %v236 = vld [vmem:[#allocation2] sm:$0xff]
    %v237 = vld [vmem:[#allocation2 + $0x8] sm:$0xff]
    %v238 = vld [vmem:[#allocation2 + $0x10] sm:$0xff]
    %v239 = vld [vmem:[#allocation2 + $0x18] sm:$0xff]
    %v240 = vld [vmem:[#allocation2 + $0x20] sm:$0xff]
    %v241 = vld [vmem:[#allocation2 + $0x28] sm:$0xff]
    %v242 = vld [vmem:[#allocation2 + $0x30] sm:$0xff]
    %v243 = vld [vmem:[#allocation2 + $0x38] sm:$0xff]
    %v244 = vld [vmem:[#allocation2 + $0x40] sm:$0xff]
    %v245 = vld [vmem:[#allocation2 + $0x48] sm:$0xff]
    %v246 = vld [vmem:[#allocation2 + $0x50] sm:$0xff]
    %v247 = vld [vmem:[#allocation2 + $0x58] sm:$0xff]
    %v248 = vld [vmem:[#allocation2 + $0x60] sm:$0xff]
    %v249 = vld [vmem:[#allocation2 + $0x68] sm:$0xff]
    %v250 = vld [vmem:[#allocation2 + $0x70] sm:$0xff]
    %v251 = vld [vmem:[#allocation2 + $0x78] sm:$0xff]
    %v252 = vld [vmem:[#allocation2 + $0x80] sm:$0xff]
    %v253 = vld [vmem:[#allocation2 + $0x88] sm:$0xff]
    %v254 = vld [vmem:[#allocation2 + $0x90] sm:$0xff]
    %v255 = vld [vmem:[#allocation2 + $0x98] sm:$0xff]
    %v256 = vld [vmem:[#allocation2 + $0xa0] sm:$0xff]
    %v257 = vld [vmem:[#allocation2 + $0xa8] sm:$0xff]
    %v258 = vld [vmem:[#allocation2 + $0xb0] sm:$0xff]
    %v259 = vld [vmem:[#allocation2 + $0xb8] sm:$0xff]
    %v260 = vld [vmem:[#allocation2 + $0xc0] sm:$0xff]
    %v261 = vld [vmem:[#allocation2 + $0xc8] sm:$0xff]
    %v262 = vld [vmem:[#allocation2 + $0xd0] sm:$0xff]
    %v263 = vld [vmem:[#allocation2 + $0xd8] sm:$0xff]
    %v264 = vld [vmem:[#allocation2 + $0xe0] sm:$0xff]
    %v265 = vld [vmem:[#allocation2 + $0xe8] sm:$0xff]
    %v266 = vld [vmem:[#allocation2 + $0xf0] sm:$0xff]
    %v267 = vld [vmem:[#allocation2 + $0xf8] sm:$0xff]
    %v268 = vpack.c.bf16 %v234, %v234
    %v269 = vpack.c.bf16 %v235, %v235
    %v270 = vld [vmem:[%s4] sm:$0x3]
    %v272 = vlaneseq
    %v273 = vshrl.u32 %v272, 7
    %v274 = vsub.s32 0, %v273
    %v275 = vrot.slane %v270, %v274
    %v276 = vlaneseq
    %v277 = vshrl.u32 %v276, 7
    %v278 = vsub.s32 1, %v277
    %v279 = vrot.slane %v270, %v278
    %v314 = vunpack.c.l.b16 %v236
    %v315 = vunpack.c.h.b16 %v236
    %v316 = vunpack.c.l.b16 %v237
    %v317 = vunpack.c.h.b16 %v237
    %v318 = vunpack.c.l.b16 %v238
    %v319 = vunpack.c.h.b16 %v238
    %v320 = vunpack.c.l.b16 %v239
    %v321 = vunpack.c.h.b16 %v239
    %v322 = vunpack.c.l.b16 %v240
    %v323 = vunpack.c.h.b16 %v240
    %v324 = vunpack.c.l.b16 %v241
    %v325 = vunpack.c.h.b16 %v241
    %v326 = vunpack.c.l.b16 %v242
    %v327 = vunpack.c.h.b16 %v242
    %v328 = vunpack.c.l.b16 %v243
    %v329 = vunpack.c.h.b16 %v243
    %v330 = vunpack.c.l.b16 %v244
    %v331 = vunpack.c.h.b16 %v244
    %v332 = vunpack.c.l.b16 %v245
    %v333 = vunpack.c.h.b16 %v245
    %v334 = vunpack.c.l.b16 %v246
    %v335 = vunpack.c.h.b16 %v246
    %v336 = vunpack.c.l.b16 %v247
    %v337 = vunpack.c.h.b16 %v247
    %v338 = vunpack.c.l.b16 %v248
    %v339 = vunpack.c.h.b16 %v248
    %v340 = vunpack.c.l.b16 %v249
    %v341 = vunpack.c.h.b16 %v249
    %v342 = vunpack.c.l.b16 %v250
    %v343 = vunpack.c.h.b16 %v250
    %v344 = vunpack.c.l.b16 %v251
    %v345 = vunpack.c.h.b16 %v251
    %v346 = vunpack.c.l.b16 %v252
    %v347 = vunpack.c.h.b16 %v252
    %v348 = vunpack.c.l.b16 %v253
    %v349 = vunpack.c.h.b16 %v253
    %v350 = vunpack.c.l.b16 %v254
    %v351 = vunpack.c.h.b16 %v254
    %v352 = vunpack.c.l.b16 %v255
    %v353 = vunpack.c.h.b16 %v255
    %v354 = vunpack.c.l.b16 %v256
    %v355 = vunpack.c.h.b16 %v256
    %v356 = vunpack.c.l.b16 %v257
    %v357 = vunpack.c.h.b16 %v257
    %v358 = vunpack.c.l.b16 %v258
    %v359 = vunpack.c.h.b16 %v258
    %v360 = vunpack.c.l.b16 %v259
    %v361 = vunpack.c.h.b16 %v259
    %v362 = vunpack.c.l.b16 %v260
    %v363 = vunpack.c.h.b16 %v260
    %v364 = vunpack.c.l.b16 %v261
    %v365 = vunpack.c.h.b16 %v261
    %v366 = vunpack.c.l.b16 %v262
    %v367 = vunpack.c.h.b16 %v262
    %v368 = vunpack.c.l.b16 %v263
    %v369 = vunpack.c.h.b16 %v263
    %v370 = vunpack.c.l.b16 %v264
    %v371 = vunpack.c.h.b16 %v264
    %v372 = vunpack.c.l.b16 %v265
    %v373 = vunpack.c.h.b16 %v265
    %v374 = vunpack.c.l.b16 %v266
    %v375 = vunpack.c.h.b16 %v266
    %v376 = vunpack.c.l.b16 %v267
    %v377 = vunpack.c.h.b16 %v267
    %v378 = vpack.c.b16 %v316, %v314
    %v379 = vpack.c.b16 %v317, %v315
    %v380 = vpack.c.b16 %v320, %v318
    %v381 = vpack.c.b16 %v321, %v319
    %v382 = vpack.c.b16 %v324, %v322
    %v383 = vpack.c.b16 %v325, %v323
    %v384 = vpack.c.b16 %v328, %v326
    %v385 = vpack.c.b16 %v329, %v327
    %v386 = vpack.c.b16 %v332, %v330
    %v387 = vpack.c.b16 %v333, %v331
    %v388 = vpack.c.b16 %v336, %v334
    %v389 = vpack.c.b16 %v337, %v335
    %v390 = vpack.c.b16 %v340, %v338
    %v391 = vpack.c.b16 %v341, %v339
    %v392 = vpack.c.b16 %v344, %v342
    %v393 = vpack.c.b16 %v345, %v343
    %v394 = vpack.c.b16 %v348, %v346
    %v395 = vpack.c.b16 %v349, %v347
    %v396 = vpack.c.b16 %v352, %v350
    %v397 = vpack.c.b16 %v353, %v351
    %v398 = vpack.c.b16 %v356, %v354
    %v399 = vpack.c.b16 %v357, %v355
    %v400 = vpack.c.b16 %v360, %v358
    %v401 = vpack.c.b16 %v361, %v359
    %v402 = vpack.c.b16 %v364, %v362
    %v403 = vpack.c.b16 %v365, %v363
    %v404 = vpack.c.b16 %v368, %v366
    %v405 = vpack.c.b16 %v369, %v367
    %v406 = vpack.c.b16 %v372, %v370
    %v407 = vpack.c.b16 %v373, %v371
    %v408 = vpack.c.b16 %v376, %v374
    %v409 = vpack.c.b16 %v377, %v375
    %442 = vmatprep.subr.bf16.mxu0 %v379
    %443 = vmatpush1.bf16.msra.mxu0 %v378
    %444 = vmatprep.subr.bf16.mxu0 %v381
    %445 = vmatpush1.bf16.msra.mxu0 %v380
    %446 = vmatprep.subr.bf16.mxu0 %v383
    %447 = vmatpush1.bf16.msra.mxu0 %v382
    %448 = vmatprep.subr.bf16.mxu0 %v385
    %449 = vmatpush1.bf16.msra.mxu0 %v384
    %450 = vmatprep.subr.bf16.mxu0 %v387
    %451 = vmatpush1.bf16.msra.mxu0 %v386
    %452 = vmatprep.subr.bf16.mxu0 %v389
    %453 = vmatpush1.bf16.msra.mxu0 %v388
    %454 = vmatprep.subr.bf16.mxu0 %v391
    %455 = vmatpush1.bf16.msra.mxu0 %v390
    %456 = vmatprep.subr.bf16.mxu0 %v393
    %457 = vmatpush1.bf16.msra.mxu0 %v392
    %458 = vmatprep.subr.bf16.mxu0 %v395
    %459 = vmatpush1.bf16.msra.mxu0 %v394
    %460 = vmatprep.subr.bf16.mxu0 %v397
    %461 = vmatpush1.bf16.msra.mxu0 %v396
    %462 = vmatprep.subr.bf16.mxu0 %v399
    %463 = vmatpush1.bf16.msra.mxu0 %v398
    %464 = vmatprep.subr.bf16.mxu0 %v401
    %465 = vmatpush1.bf16.msra.mxu0 %v400
    %466 = vmatprep.subr.bf16.mxu0 %v403
    %467 = vmatpush1.bf16.msra.mxu0 %v402
    %468 = vmatprep.subr.bf16.mxu0 %v405
    %469 = vmatpush1.bf16.msra.mxu0 %v404
    %470 = vmatprep.subr.bf16.mxu0 %v407
    %471 = vmatpush1.bf16.msra.mxu0 %v406
    %472 = vmatprep.subr.bf16.mxu0 %v409
    %473 = vmatpush1.bf16.msra.mxu0 %v408
    %474 = vmatprep.mubr.bf16.mxu0 %v269
    %475 = vmatmul.mubr.bf16.gmra.mrb[0].mxu0 %v268
    %v476 = vpop.f32.mrb[0].mxu0
    %v477 = vadd.f32 %v275, %v476
    %v478 = vpop.f32.mrb[0].mxu0
    %v479 = vadd.f32 %v279, %v478
    %v480 = vpop.f32.mrb[0].mxu0
    %v481 = vpop.f32.mrb[0].mxu0
    %482 = vdwg.mxu0
    %v483 = vtanh.pop %v477
    %v484 = vtanh.pop %v479
    %v485 = vld [vmem:[#allocation5] sm:$0xff]
    %v486 = vld [vmem:[#allocation5 + $0x8] sm:$0xff]
    %v487 = vld [vmem:[#allocation5 + $0x10] sm:$0xff]
    %v488 = vld [vmem:[#allocation5 + $0x18] sm:$0xff]
    %v489 = vld [vmem:[#allocation5 + $0x20] sm:$0xff]
    %v490 = vld [vmem:[#allocation5 + $0x28] sm:$0xff]
    %v491 = vld [vmem:[#allocation5 + $0x30] sm:$0xff]
    %v492 = vld [vmem:[#allocation5 + $0x38] sm:$0xff]
    %v493 = vld [vmem:[#allocation5 + $0x40] sm:$0xff]
    %v494 = vld [vmem:[#allocation5 + $0x48] sm:$0xff]
    %v495 = vld [vmem:[#allocation5 + $0x50] sm:$0xff]
    %v496 = vld [vmem:[#allocation5 + $0x58] sm:$0xff]
    %v497 = vld [vmem:[#allocation5 + $0x60] sm:$0xff]
    %v498 = vld [vmem:[#allocation5 + $0x68] sm:$0xff]
    %v499 = vld [vmem:[#allocation5 + $0x70] sm:$0xff]
    %v500 = vld [vmem:[#allocation5 + $0x78] sm:$0xff]
    %v501 = vld [vmem:[#allocation5 + $0x80] sm:$0xff]
    %v502 = vld [vmem:[#allocation5 + $0x88] sm:$0xff]
    %v503 = vld [vmem:[#allocation5 + $0x90] sm:$0xff]
    %v504 = vld [vmem:[#allocation5 + $0x98] sm:$0xff]
    %v505 = vld [vmem:[#allocation5 + $0xa0] sm:$0xff]
    %v506 = vld [vmem:[#allocation5 + $0xa8] sm:$0xff]
    %v507 = vld [vmem:[#allocation5 + $0xb0] sm:$0xff]
    %v508 = vld [vmem:[#allocation5 + $0xb8] sm:$0xff]
    %v509 = vld [vmem:[#allocation5 + $0xc0] sm:$0xff]
    %v510 = vld [vmem:[#allocation5 + $0xc8] sm:$0xff]
    %v511 = vld [vmem:[#allocation5 + $0xd0] sm:$0xff]
    %v512 = vld [vmem:[#allocation5 + $0xd8] sm:$0xff]
    %v513 = vld [vmem:[#allocation5 + $0xe0] sm:$0xff]
    %v514 = vld [vmem:[#allocation5 + $0xe8] sm:$0xff]
    %v515 = vld [vmem:[#allocation5 + $0xf0] sm:$0xff]
    %v516 = vld [vmem:[#allocation5 + $0xf8] sm:$0xff]
    %v517 = vpack.c.bf16 %v483, %v483
    %v518 = vpack.c.bf16 %v484, %v484
    %v519 = vld [vmem:[%s6] sm:$0x3]
    %v521 = vlaneseq
    %v522 = vshrl.u32 %v521, 7
    %v523 = vsub.s32 0, %v522
    %v524 = vrot.slane %v519, %v523
    %v525 = vlaneseq
    %v526 = vshrl.u32 %v525, 7
    %v527 = vsub.s32 1, %v526
    %v528 = vrot.slane %v519, %v527
    %v563 = vunpack.c.l.b16 %v485
    %v564 = vunpack.c.h.b16 %v485
    %v565 = vunpack.c.l.b16 %v486
    %v566 = vunpack.c.h.b16 %v486
    %v567 = vunpack.c.l.b16 %v487
    %v568 = vunpack.c.h.b16 %v487
    %v569 = vunpack.c.l.b16 %v488
    %v570 = vunpack.c.h.b16 %v488
    %v571 = vunpack.c.l.b16 %v489
    %v572 = vunpack.c.h.b16 %v489
    %v573 = vunpack.c.l.b16 %v490
    %v574 = vunpack.c.h.b16 %v490
    %v575 = vunpack.c.l.b16 %v491
    %v576 = vunpack.c.h.b16 %v491
    %v577 = vunpack.c.l.b16 %v492
    %v578 = vunpack.c.h.b16 %v492
    %v579 = vunpack.c.l.b16 %v493
    %v580 = vunpack.c.h.b16 %v493
    %v581 = vunpack.c.l.b16 %v494
    %v582 = vunpack.c.h.b16 %v494
    %v583 = vunpack.c.l.b16 %v495
    %v584 = vunpack.c.h.b16 %v495
    %v585 = vunpack.c.l.b16 %v496
    %v586 = vunpack.c.h.b16 %v496
    %v587 = vunpack.c.l.b16 %v497
    %v588 = vunpack.c.h.b16 %v497
    %v589 = vunpack.c.l.b16 %v498
    %v590 = vunpack.c.h.b16 %v498
    %v591 = vunpack.c.l.b16 %v499
    %v592 = vunpack.c.h.b16 %v499
    %v593 = vunpack.c.l.b16 %v500
    %v594 = vunpack.c.h.b16 %v500
    %v595 = vunpack.c.l.b16 %v501
    %v596 = vunpack.c.h.b16 %v501
    %v597 = vunpack.c.l.b16 %v502
    %v598 = vunpack.c.h.b16 %v502
    %v599 = vunpack.c.l.b16 %v503
    %v600 = vunpack.c.h.b16 %v503
    %v601 = vunpack.c.l.b16 %v504
    %v602 = vunpack.c.h.b16 %v504
    %v603 = vunpack.c.l.b16 %v505
    %v604 = vunpack.c.h.b16 %v505
    %v605 = vunpack.c.l.b16 %v506
    %v606 = vunpack.c.h.b16 %v506
    %v607 = vunpack.c.l.b16 %v507
    %v608 = vunpack.c.h.b16 %v507
    %v609 = vunpack.c.l.b16 %v508
    %v610 = vunpack.c.h.b16 %v508
    %v611 = vunpack.c.l.b16 %v509
    %v612 = vunpack.c.h.b16 %v509
    %v613 = vunpack.c.l.b16 %v510
    %v614 = vunpack.c.h.b16 %v510
    %v615 = vunpack.c.l.b16 %v511
    %v616 = vunpack.c.h.b16 %v511
    %v617 = vunpack.c.l.b16 %v512
    %v618 = vunpack.c.h.b16 %v512
    %v619 = vunpack.c.l.b16 %v513
    %v620 = vunpack.c.h.b16 %v513
    %v621 = vunpack.c.l.b16 %v514
    %v622 = vunpack.c.h.b16 %v514
    %v623 = vunpack.c.l.b16 %v515
    %v624 = vunpack.c.h.b16 %v515
    %v625 = vunpack.c.l.b16 %v516
    %v626 = vunpack.c.h.b16 %v516
    %v627 = vpack.c.b16 %v565, %v563
    %v628 = vpack.c.b16 %v566, %v564
    %v629 = vpack.c.b16 %v569, %v567
    %v630 = vpack.c.b16 %v570, %v568
    %v631 = vpack.c.b16 %v573, %v571
    %v632 = vpack.c.b16 %v574, %v572
    %v633 = vpack.c.b16 %v577, %v575
    %v634 = vpack.c.b16 %v578, %v576
    %v635 = vpack.c.b16 %v581, %v579
    %v636 = vpack.c.b16 %v582, %v580
    %v637 = vpack.c.b16 %v585, %v583
    %v638 = vpack.c.b16 %v586, %v584
    %v639 = vpack.c.b16 %v589, %v587
    %v640 = vpack.c.b16 %v590, %v588
    %v641 = vpack.c.b16 %v593, %v591
    %v642 = vpack.c.b16 %v594, %v592
    %v643 = vpack.c.b16 %v597, %v595
    %v644 = vpack.c.b16 %v598, %v596
    %v645 = vpack.c.b16 %v601, %v599
    %v646 = vpack.c.b16 %v602, %v600
    %v647 = vpack.c.b16 %v605, %v603
    %v648 = vpack.c.b16 %v606, %v604
    %v649 = vpack.c.b16 %v609, %v607
    %v650 = vpack.c.b16 %v610, %v608
    %v651 = vpack.c.b16 %v613, %v611
    %v652 = vpack.c.b16 %v614, %v612
    %v653 = vpack.c.b16 %v617, %v615
    %v654 = vpack.c.b16 %v618, %v616
    %v655 = vpack.c.b16 %v621, %v619
    %v656 = vpack.c.b16 %v622, %v620
    %v657 = vpack.c.b16 %v625, %v623
    %v658 = vpack.c.b16 %v626, %v624
    %691 = vmatprep.subr.bf16.mxu0 %v628
    %692 = vmatpush1.bf16.msra.mxu0 %v627
    %693 = vmatprep.subr.bf16.mxu0 %v630
    %694 = vmatpush1.bf16.msra.mxu0 %v629
    %695 = vmatprep.subr.bf16.mxu0 %v632
    %696 = vmatpush1.bf16.msra.mxu0 %v631
    %697 = vmatprep.subr.bf16.mxu0 %v634
    %698 = vmatpush1.bf16.msra.mxu0 %v633
    %699 = vmatprep.subr.bf16.mxu0 %v636
    %700 = vmatpush1.bf16.msra.mxu0 %v635
    %701 = vmatprep.subr.bf16.mxu0 %v638
    %702 = vmatpush1.bf16.msra.mxu0 %v637
    %703 = vmatprep.subr.bf16.mxu0 %v640
    %704 = vmatpush1.bf16.msra.mxu0 %v639
    %705 = vmatprep.subr.bf16.mxu0 %v642
    %706 = vmatpush1.bf16.msra.mxu0 %v641
    %707 = vmatprep.subr.bf16.mxu0 %v644
    %708 = vmatpush1.bf16.msra.mxu0 %v643
    %709 = vmatprep.subr.bf16.mxu0 %v646
    %710 = vmatpush1.bf16.msra.mxu0 %v645
    %711 = vmatprep.subr.bf16.mxu0 %v648
    %712 = vmatpush1.bf16.msra.mxu0 %v647
    %713 = vmatprep.subr.bf16.mxu0 %v650
    %714 = vmatpush1.bf16.msra.mxu0 %v649
    %715 = vmatprep.subr.bf16.mxu0 %v652
    %716 = vmatpush1.bf16.msra.mxu0 %v651
    %717 = vmatprep.subr.bf16.mxu0 %v654
    %718 = vmatpush1.bf16.msra.mxu0 %v653
    %719 = vmatprep.subr.bf16.mxu0 %v656
    %720 = vmatpush1.bf16.msra.mxu0 %v655
    %721 = vmatprep.subr.bf16.mxu0 %v658
    %722 = vmatpush1.bf16.msra.mxu0 %v657
    %723 = vmatprep.mubr.bf16.mxu0 %v518
    %724 = vmatmul.mubr.bf16.gmra.mrb[0].mxu0 %v517
    %v725 = vpop.f32.mrb[0].mxu0
    %v726 = vadd.f32 %v524, %v725
    %v727 = vpop.f32.mrb[0].mxu0
    %v728 = vadd.f32 %v528, %v727
    %v729 = vpop.f32.mrb[0].mxu0
    %v730 = vpop.f32.mrb[0].mxu0
    %731 = vdwg.mxu0
    %v732 = vadd.f32 %v726, %v234
    %v733 = vadd.f32 %v728, %v235
    %v734 = vtanh.pop %v732
    %v735 = vtanh.pop %v733
    %v736 = vld [vmem:[#allocation7] sm:$0xff]
    %v737 = vld [vmem:[#allocation7 + $0x8] sm:$0xff]
    %v738 = vld [vmem:[#allocation7 + $0x10] sm:$0xff]
    %v739 = vld [vmem:[#allocation7 + $0x18] sm:$0xff]
    %v740 = vld [vmem:[#allocation7 + $0x20] sm:$0xff]
    %v741 = vld [vmem:[#allocation7 + $0x28] sm:$0xff]
    %v742 = vld [vmem:[#allocation7 + $0x30] sm:$0xff]
    %v743 = vld [vmem:[#allocation7 + $0x38] sm:$0xff]
    %v744 = vld [vmem:[#allocation7 + $0x40] sm:$0xff]
    %v745 = vld [vmem:[#allocation7 + $0x48] sm:$0xff]
    %v746 = vld [vmem:[#allocation7 + $0x50] sm:$0xff]
    %v747 = vld [vmem:[#allocation7 + $0x58] sm:$0xff]
    %v748 = vld [vmem:[#allocation7 + $0x60] sm:$0xff]
    %v749 = vld [vmem:[#allocation7 + $0x68] sm:$0xff]
    %v750 = vld [vmem:[#allocation7 + $0x70] sm:$0xff]
    %v751 = vld [vmem:[#allocation7 + $0x78] sm:$0xff]
    %v752 = vld [vmem:[#allocation7 + $0x80] sm:$0xff]
    %v753 = vld [vmem:[#allocation7 + $0x88] sm:$0xff]
    %v754 = vld [vmem:[#allocation7 + $0x90] sm:$0xff]
    %v755 = vld [vmem:[#allocation7 + $0x98] sm:$0xff]
    %v756 = vld [vmem:[#allocation7 + $0xa0] sm:$0xff]
    %v757 = vld [vmem:[#allocation7 + $0xa8] sm:$0xff]
    %v758 = vld [vmem:[#allocation7 + $0xb0] sm:$0xff]
    %v759 = vld [vmem:[#allocation7 + $0xb8] sm:$0xff]
    %v760 = vld [vmem:[#allocation7 + $0xc0] sm:$0xff]
    %v761 = vld [vmem:[#allocation7 + $0xc8] sm:$0xff]
    %v762 = vld [vmem:[#allocation7 + $0xd0] sm:$0xff]
    %v763 = vld [vmem:[#allocation7 + $0xd8] sm:$0xff]
    %v764 = vld [vmem:[#allocation7 + $0xe0] sm:$0xff]
    %v765 = vld [vmem:[#allocation7 + $0xe8] sm:$0xff]
    %v766 = vld [vmem:[#allocation7 + $0xf0] sm:$0xff]
    %v767 = vld [vmem:[#allocation7 + $0xf8] sm:$0xff]
    %v768 = vpack.c.bf16 %v734, %v734
    %v769 = vpack.c.bf16 %v735, %v735
    %v770 = vld [vmem:[%s8] sm:$0x3]
    %v772 = vlaneseq
    %v773 = vshrl.u32 %v772, 7
    %v774 = vsub.s32 0, %v773
    %v775 = vrot.slane %v770, %v774
    %v776 = vlaneseq
    %v777 = vshrl.u32 %v776, 7
    %v778 = vsub.s32 1, %v777
    %v779 = vrot.slane %v770, %v778
    %v814 = vunpack.c.l.b16 %v736
    %v815 = vunpack.c.h.b16 %v736
    %v816 = vunpack.c.l.b16 %v737
    %v817 = vunpack.c.h.b16 %v737
    %v818 = vunpack.c.l.b16 %v738
    %v819 = vunpack.c.h.b16 %v738
    %v820 = vunpack.c.l.b16 %v739
    %v821 = vunpack.c.h.b16 %v739
    %v822 = vunpack.c.l.b16 %v740
    %v823 = vunpack.c.h.b16 %v740
    %v824 = vunpack.c.l.b16 %v741
    %v825 = vunpack.c.h.b16 %v741
    %v826 = vunpack.c.l.b16 %v742
    %v827 = vunpack.c.h.b16 %v742
    %v828 = vunpack.c.l.b16 %v743
    %v829 = vunpack.c.h.b16 %v743
    %v830 = vunpack.c.l.b16 %v744
    %v831 = vunpack.c.h.b16 %v744
    %v832 = vunpack.c.l.b16 %v745
    %v833 = vunpack.c.h.b16 %v745
    %v834 = vunpack.c.l.b16 %v746
    %v835 = vunpack.c.h.b16 %v746
    %v836 = vunpack.c.l.b16 %v747
    %v837 = vunpack.c.h.b16 %v747
    %v838 = vunpack.c.l.b16 %v748
    %v839 = vunpack.c.h.b16 %v748
    %v840 = vunpack.c.l.b16 %v749
    %v841 = vunpack.c.h.b16 %v749
    %v842 = vunpack.c.l.b16 %v750
    %v843 = vunpack.c.h.b16 %v750
    %v844 = vunpack.c.l.b16 %v751
    %v845 = vunpack.c.h.b16 %v751
    %v846 = vunpack.c.l.b16 %v752
    %v847 = vunpack.c.h.b16 %v752
    %v848 = vunpack.c.l.b16 %v753
    %v849 = vunpack.c.h.b16 %v753
    %v850 = vunpack.c.l.b16 %v754
    %v851 = vunpack.c.h.b16 %v754
    %v852 = vunpack.c.l.b16 %v755
    %v853 = vunpack.c.h.b16 %v755
    %v854 = vunpack.c.l.b16 %v756
    %v855 = vunpack.c.h.b16 %v756
    %v856 = vunpack.c.l.b16 %v757
    %v857 = vunpack.c.h.b16 %v757
    %v858 = vunpack.c.l.b16 %v758
    %v859 = vunpack.c.h.b16 %v758
    %v860 = vunpack.c.l.b16 %v759
    %v861 = vunpack.c.h.b16 %v759
    %v862 = vunpack.c.l.b16 %v760
    %v863 = vunpack.c.h.b16 %v760
    %v864 = vunpack.c.l.b16 %v761
    %v865 = vunpack.c.h.b16 %v761
    %v866 = vunpack.c.l.b16 %v762
    %v867 = vunpack.c.h.b16 %v762
    %v868 = vunpack.c.l.b16 %v763
    %v869 = vunpack.c.h.b16 %v763
    %v870 = vunpack.c.l.b16 %v764
    %v871 = vunpack.c.h.b16 %v764
    %v872 = vunpack.c.l.b16 %v765
    %v873 = vunpack.c.h.b16 %v765
    %v874 = vunpack.c.l.b16 %v766
    %v875 = vunpack.c.h.b16 %v766
    %v876 = vunpack.c.l.b16 %v767
    %v877 = vunpack.c.h.b16 %v767
    %v878 = vpack.c.b16 %v816, %v814
    %v879 = vpack.c.b16 %v817, %v815
    %v880 = vpack.c.b16 %v820, %v818
    %v881 = vpack.c.b16 %v821, %v819
    %v882 = vpack.c.b16 %v824, %v822
    %v883 = vpack.c.b16 %v825, %v823
    %v884 = vpack.c.b16 %v828, %v826
    %v885 = vpack.c.b16 %v829, %v827
    %v886 = vpack.c.b16 %v832, %v830
    %v887 = vpack.c.b16 %v833, %v831
    %v888 = vpack.c.b16 %v836, %v834
    %v889 = vpack.c.b16 %v837, %v835
    %v890 = vpack.c.b16 %v840, %v838
    %v891 = vpack.c.b16 %v841, %v839
    %v892 = vpack.c.b16 %v844, %v842
    %v893 = vpack.c.b16 %v845, %v843
    %v894 = vpack.c.b16 %v848, %v846
    %v895 = vpack.c.b16 %v849, %v847
    %v896 = vpack.c.b16 %v852, %v850
    %v897 = vpack.c.b16 %v853, %v851
    %v898 = vpack.c.b16 %v856, %v854
    %v899 = vpack.c.b16 %v857, %v855
    %v900 = vpack.c.b16 %v860, %v858
    %v901 = vpack.c.b16 %v861, %v859
    %v902 = vpack.c.b16 %v864, %v862
    %v903 = vpack.c.b16 %v865, %v863
    %v904 = vpack.c.b16 %v868, %v866
    %v905 = vpack.c.b16 %v869, %v867
    %v906 = vpack.c.b16 %v872, %v870
    %v907 = vpack.c.b16 %v873, %v871
    %v908 = vpack.c.b16 %v876, %v874
    %v909 = vpack.c.b16 %v877, %v875
    %942 = vmatprep.subr.bf16.mxu0 %v879
    %943 = vmatpush1.bf16.msra.mxu0 %v878
    %944 = vmatprep.subr.bf16.mxu0 %v881
    %945 = vmatpush1.bf16.msra.mxu0 %v880
    %946 = vmatprep.subr.bf16.mxu0 %v883
    %947 = vmatpush1.bf16.msra.mxu0 %v882
    %948 = vmatprep.subr.bf16.mxu0 %v885
    %949 = vmatpush1.bf16.msra.mxu0 %v884
    %950 = vmatprep.subr.bf16.mxu0 %v887
    %951 = vmatpush1.bf16.msra.mxu0 %v886
    %952 = vmatprep.subr.bf16.mxu0 %v889
    %953 = vmatpush1.bf16.msra.mxu0 %v888
    %954 = vmatprep.subr.bf16.mxu0 %v891
    %955 = vmatpush1.bf16.msra.mxu0 %v890
    %956 = vmatprep.subr.bf16.mxu0 %v893
    %957 = vmatpush1.bf16.msra.mxu0 %v892
    %958 = vmatprep.subr.bf16.mxu0 %v895
    %959 = vmatpush1.bf16.msra.mxu0 %v894
    %960 = vmatprep.subr.bf16.mxu0 %v897
    %961 = vmatpush1.bf16.msra.mxu0 %v896
    %962 = vmatprep.subr.bf16.mxu0 %v899
    %963 = vmatpush1.bf16.msra.mxu0 %v898
    %964 = vmatprep.subr.bf16.mxu0 %v901
    %965 = vmatpush1.bf16.msra.mxu0 %v900
    %966 = vmatprep.subr.bf16.mxu0 %v903
    %967 = vmatpush1.bf16.msra.mxu0 %v902
    %968 = vmatprep.subr.bf16.mxu0 %v905
    %969 = vmatpush1.bf16.msra.mxu0 %v904
    %970 = vmatprep.subr.bf16.mxu0 %v907
    %971 = vmatpush1.bf16.msra.mxu0 %v906
    %972 = vmatprep.subr.bf16.mxu0 %v909
    %973 = vmatpush1.bf16.msra.mxu0 %v908
    %974 = vmatprep.mubr.bf16.mxu0 %v769
    %975 = vmatmul.mubr.bf16.gmra.mrb[0].mxu0 %v768
    %v976 = vpop.f32.mrb[0].mxu0
    %v977 = vadd.f32 %v775, %v976
    %v978 = vpop.f32.mrb[0].mxu0
    %v979 = vadd.f32 %v779, %v978
    %v980 = vpop.f32.mrb[0].mxu0
    %v981 = vpop.f32.mrb[0].mxu0
    %982 = vdwg.mxu0
    %v983 = vtanh.pop %v977
    %v984 = vtanh.pop %v979
    %v985 = vld [vmem:[#allocation8] sm:$0xff]
    %v986 = vld [vmem:[#allocation8 + $0x8] sm:$0xff]
    %v987 = vld [vmem:[#allocation8 + $0x10] sm:$0xff]
    %v988 = vld [vmem:[#allocation8 + $0x18] sm:$0xff]
    %v989 = vld [vmem:[#allocation8 + $0x20] sm:$0xff]
    %v990 = vld [vmem:[#allocation8 + $0x28] sm:$0xff]
    %v991 = vld [vmem:[#allocation8 + $0x30] sm:$0xff]
    %v992 = vld [vmem:[#allocation8 + $0x38] sm:$0xff]
    %v993 = vld [vmem:[#allocation8 + $0x40] sm:$0xff]
    %v994 = vld [vmem:[#allocation8 + $0x48] sm:$0xff]
    %v995 = vld [vmem:[#allocation8 + $0x50] sm:$0xff]
    %v996 = vld [vmem:[#allocation8 + $0x58] sm:$0xff]
    %v997 = vld [vmem:[#allocation8 + $0x60] sm:$0xff]
    %v998 = vld [vmem:[#allocation8 + $0x68] sm:$0xff]
    %v999 = vld [vmem:[#allocation8 + $0x70] sm:$0xff]
    %v1000 = vld [vmem:[#allocation8 + $0x78] sm:$0xff]
    %v1001 = vld [vmem:[#allocation8 + $0x80] sm:$0xff]
    %v1002 = vld [vmem:[#allocation8 + $0x88] sm:$0xff]
    %v1003 = vld [vmem:[#allocation8 + $0x90] sm:$0xff]
    %v1004 = vld [vmem:[#allocation8 + $0x98] sm:$0xff]
    %v1005 = vld [vmem:[#allocation8 + $0xa0] sm:$0xff]
    %v1006 = vld [vmem:[#allocation8 + $0xa8] sm:$0xff]
    %v1007 = vld [vmem:[#allocation8 + $0xb0] sm:$0xff]
    %v1008 = vld [vmem:[#allocation8 + $0xb8] sm:$0xff]
    %v1009 = vld [vmem:[#allocation8 + $0xc0] sm:$0xff]
    %v1010 = vld [vmem:[#allocation8 + $0xc8] sm:$0xff]
    %v1011 = vld [vmem:[#allocation8 + $0xd0] sm:$0xff]
    %v1012 = vld [vmem:[#allocation8 + $0xd8] sm:$0xff]
    %v1013 = vld [vmem:[#allocation8 + $0xe0] sm:$0xff]
    %v1014 = vld [vmem:[#allocation8 + $0xe8] sm:$0xff]
    %v1015 = vld [vmem:[#allocation8 + $0xf0] sm:$0xff]
    %v1016 = vld [vmem:[#allocation8 + $0xf8] sm:$0xff]
    %v1017 = vpack.c.bf16 %v983, %v983
    %v1018 = vpack.c.bf16 %v984, %v984
    %v1019 = vld [vmem:[%s10] sm:$0x3]
    %v1021 = vlaneseq
    %v1022 = vshrl.u32 %v1021, 7
    %v1023 = vsub.s32 0, %v1022
    %v1024 = vrot.slane %v1019, %v1023
    %v1025 = vlaneseq
    %v1026 = vshrl.u32 %v1025, 7
    %v1027 = vsub.s32 1, %v1026
    %v1028 = vrot.slane %v1019, %v1027
    %v1063 = vunpack.c.l.b16 %v985
    %v1064 = vunpack.c.h.b16 %v985
    %v1065 = vunpack.c.l.b16 %v986
    %v1066 = vunpack.c.h.b16 %v986
    %v1067 = vunpack.c.l.b16 %v987
    %v1068 = vunpack.c.h.b16 %v987
    %v1069 = vunpack.c.l.b16 %v988
    %v1070 = vunpack.c.h.b16 %v988
    %v1071 = vunpack.c.l.b16 %v989
    %v1072 = vunpack.c.h.b16 %v989
    %v1073 = vunpack.c.l.b16 %v990
    %v1074 = vunpack.c.h.b16 %v990
    %v1075 = vunpack.c.l.b16 %v991
    %v1076 = vunpack.c.h.b16 %v991
    %v1077 = vunpack.c.l.b16 %v992
    %v1078 = vunpack.c.h.b16 %v992
    %v1079 = vunpack.c.l.b16 %v993
    %v1080 = vunpack.c.h.b16 %v993
    %v1081 = vunpack.c.l.b16 %v994
    %v1082 = vunpack.c.h.b16 %v994
    %v1083 = vunpack.c.l.b16 %v995
    %v1084 = vunpack.c.h.b16 %v995
    %v1085 = vunpack.c.l.b16 %v996
    %v1086 = vunpack.c.h.b16 %v996
    %v1087 = vunpack.c.l.b16 %v997
    %v1088 = vunpack.c.h.b16 %v997
    %v1089 = vunpack.c.l.b16 %v998
    %v1090 = vunpack.c.h.b16 %v998
    %v1091 = vunpack.c.l.b16 %v999
    %v1092 = vunpack.c.h.b16 %v999
    %v1093 = vunpack.c.l.b16 %v1000
    %v1094 = vunpack.c.h.b16 %v1000
    %v1095 = vunpack.c.l.b16 %v1001
    %v1096 = vunpack.c.h.b16 %v1001
    %v1097 = vunpack.c.l.b16 %v1002
    %v1098 = vunpack.c.h.b16 %v1002
    %v1099 = vunpack.c.l.b16 %v1003
    %v1100 = vunpack.c.h.b16 %v1003
    %v1101 = vunpack.c.l.b16 %v1004
    %v1102 = vunpack.c.h.b16 %v1004
    %v1103 = vunpack.c.l.b16 %v1005
    %v1104 = vunpack.c.h.b16 %v1005
    %v1105 = vunpack.c.l.b16 %v1006
    %v1106 = vunpack.c.h.b16 %v1006
    %v1107 = vunpack.c.l.b16 %v1007
    %v1108 = vunpack.c.h.b16 %v1007
    %v1109 = vunpack.c.l.b16 %v1008
    %v1110 = vunpack.c.h.b16 %v1008
    %v1111 = vunpack.c.l.b16 %v1009
    %v1112 = vunpack.c.h.b16 %v1009
    %v1113 = vunpack.c.l.b16 %v1010
    %v1114 = vunpack.c.h.b16 %v1010
    %v1115 = vunpack.c.l.b16 %v1011
    %v1116 = vunpack.c.h.b16 %v1011
    %v1117 = vunpack.c.l.b16 %v1012
    %v1118 = vunpack.c.h.b16 %v1012
    %v1119 = vunpack.c.l.b16 %v1013
    %v1120 = vunpack.c.h.b16 %v1013
    %v1121 = vunpack.c.l.b16 %v1014
    %v1122 = vunpack.c.h.b16 %v1014
    %v1123 = vunpack.c.l.b16 %v1015
    %v1124 = vunpack.c.h.b16 %v1015
    %v1125 = vunpack.c.l.b16 %v1016
    %v1126 = vunpack.c.h.b16 %v1016
    %v1127 = vpack.c.b16 %v1065, %v1063
    %v1128 = vpack.c.b16 %v1066, %v1064
    %v1129 = vpack.c.b16 %v1069, %v1067
    %v1130 = vpack.c.b16 %v1070, %v1068
    %v1131 = vpack.c.b16 %v1073, %v1071
    %v1132 = vpack.c.b16 %v1074, %v1072
    %v1133 = vpack.c.b16 %v1077, %v1075
    %v1134 = vpack.c.b16 %v1078, %v1076
    %v1135 = vpack.c.b16 %v1081, %v1079
    %v1136 = vpack.c.b16 %v1082, %v1080
    %v1137 = vpack.c.b16 %v1085, %v1083
    %v1138 = vpack.c.b16 %v1086, %v1084
    %v1139 = vpack.c.b16 %v1089, %v1087
    %v1140 = vpack.c.b16 %v1090, %v1088
    %v1141 = vpack.c.b16 %v1093, %v1091
    %v1142 = vpack.c.b16 %v1094, %v1092
    %v1143 = vpack.c.b16 %v1097, %v1095
    %v1144 = vpack.c.b16 %v1098, %v1096
    %v1145 = vpack.c.b16 %v1101, %v1099
    %v1146 = vpack.c.b16 %v1102, %v1100
    %v1147 = vpack.c.b16 %v1105, %v1103
    %v1148 = vpack.c.b16 %v1106, %v1104
    %v1149 = vpack.c.b16 %v1109, %v1107
    %v1150 = vpack.c.b16 %v1110, %v1108
    %v1151 = vpack.c.b16 %v1113, %v1111
    %v1152 = vpack.c.b16 %v1114, %v1112
    %v1153 = vpack.c.b16 %v1117, %v1115
    %v1154 = vpack.c.b16 %v1118, %v1116
    %v1155 = vpack.c.b16 %v1121, %v1119
    %v1156 = vpack.c.b16 %v1122, %v1120
    %v1157 = vpack.c.b16 %v1125, %v1123
    %v1158 = vpack.c.b16 %v1126, %v1124
    %1191 = vmatprep.subr.bf16.mxu0 %v1128
    %1192 = vmatpush1.bf16.msra.mxu0 %v1127
    %1193 = vmatprep.subr.bf16.mxu0 %v1130
    %1194 = vmatpush1.bf16.msra.mxu0 %v1129
    %1195 = vmatprep.subr.bf16.mxu0 %v1132
    %1196 = vmatpush1.bf16.msra.mxu0 %v1131
    %1197 = vmatprep.subr.bf16.mxu0 %v1134
    %1198 = vmatpush1.bf16.msra.mxu0 %v1133
    %1199 = vmatprep.subr.bf16.mxu0 %v1136
    %1200 = vmatpush1.bf16.msra.mxu0 %v1135
    %1201 = vmatprep.subr.bf16.mxu0 %v1138
    %1202 = vmatpush1.bf16.msra.mxu0 %v1137
    %1203 = vmatprep.subr.bf16.mxu0 %v1140
    %1204 = vmatpush1.bf16.msra.mxu0 %v1139
    %1205 = vmatprep.subr.bf16.mxu0 %v1142
    %1206 = vmatpush1.bf16.msra.mxu0 %v1141
    %1207 = vmatprep.subr.bf16.mxu0 %v1144
    %1208 = vmatpush1.bf16.msra.mxu0 %v1143
    %1209 = vmatprep.subr.bf16.mxu0 %v1146
    %1210 = vmatpush1.bf16.msra.mxu0 %v1145
    %1211 = vmatprep.subr.bf16.mxu0 %v1148
    %1212 = vmatpush1.bf16.msra.mxu0 %v1147
    %1213 = vmatprep.subr.bf16.mxu0 %v1150
    %1214 = vmatpush1.bf16.msra.mxu0 %v1149
    %1215 = vmatprep.subr.bf16.mxu0 %v1152
    %1216 = vmatpush1.bf16.msra.mxu0 %v1151
    %1217 = vmatprep.subr.bf16.mxu0 %v1154
    %1218 = vmatpush1.bf16.msra.mxu0 %v1153
    %1219 = vmatprep.subr.bf16.mxu0 %v1156
    %1220 = vmatpush1.bf16.msra.mxu0 %v1155
    %1221 = vmatprep.subr.bf16.mxu0 %v1158
    %1222 = vmatpush1.bf16.msra.mxu0 %v1157
    %1223 = vmatprep.mubr.bf16.mxu0 %v1018
    %1224 = vmatmul.mubr.bf16.gmra.mrb[0].mxu0 %v1017
    %v1225 = vpop.f32.mrb[0].mxu0
    %v1226 = vadd.f32 %v1024, %v1225
    %v1227 = vpop.f32.mrb[0].mxu0
    %v1228 = vadd.f32 %v1028, %v1227
    %v1229 = vpop.f32.mrb[0].mxu0
    %v1230 = vpop.f32.mrb[0].mxu0
    %1231 = vdwg.mxu0
    %v1232 = vadd.f32 %v1226, %v734
    %v1233 = vadd.f32 %v1228, %v735
    %v1234 = vtanh.pop %v1232
    %v1235 = vtanh.pop %v1233
    %v1236 = vld [vmem:[#allocation10] sm:$0xf]
    %v1237 = vld [vmem:[#allocation10 + $0x4] sm:$0xf]
    %v1238 = vld [vmem:[#allocation10 + $0x8] sm:$0xf]
    %v1239 = vld [vmem:[#allocation10 + $0xc] sm:$0xf]
    %v1240 = vld [vmem:[#allocation10 + $0x10] sm:$0xf]
    %v1241 = vld [vmem:[#allocation10 + $0x14] sm:$0xf]
    %v1242 = vld [vmem:[#allocation10 + $0x18] sm:$0xf]
    %v1243 = vld [vmem:[#allocation10 + $0x1c] sm:$0xf]
    %v1244 = vld [vmem:[#allocation10 + $0x20] sm:$0xf]
    %v1245 = vld [vmem:[#allocation10 + $0x24] sm:$0xf]
    %v1246 = vld [vmem:[#allocation10 + $0x28] sm:$0xf]
    %v1247 = vld [vmem:[#allocation10 + $0x2c] sm:$0xf]
    %v1248 = vld [vmem:[#allocation10 + $0x30] sm:$0xf]
    %v1249 = vld [vmem:[#allocation10 + $0x34] sm:$0xf]
    %v1250 = vld [vmem:[#allocation10 + $0x38] sm:$0xf]
    %v1251 = vld [vmem:[#allocation10 + $0x3c] sm:$0xf]
    %v1252 = vld [vmem:[#allocation10 + $0x40] sm:$0xf]
    %v1253 = vld [vmem:[#allocation10 + $0x44] sm:$0xf]
    %v1254 = vld [vmem:[#allocation10 + $0x48] sm:$0xf]
    %v1255 = vld [vmem:[#allocation10 + $0x4c] sm:$0xf]
    %v1256 = vld [vmem:[#allocation10 + $0x50] sm:$0xf]
    %v1257 = vld [vmem:[#allocation10 + $0x54] sm:$0xf]
    %v1258 = vld [vmem:[#allocation10 + $0x58] sm:$0xf]
    %v1259 = vld [vmem:[#allocation10 + $0x5c] sm:$0xf]
    %v1260 = vld [vmem:[#allocation10 + $0x60] sm:$0xf]
    %v1261 = vld [vmem:[#allocation10 + $0x64] sm:$0xf]
    %v1262 = vld [vmem:[#allocation10 + $0x68] sm:$0xf]
    %v1263 = vld [vmem:[#allocation10 + $0x6c] sm:$0xf]
    %v1264 = vld [vmem:[#allocation10 + $0x70] sm:$0xf]
    %v1265 = vld [vmem:[#allocation10 + $0x74] sm:$0xf]
    %v1266 = vld [vmem:[#allocation10 + $0x78] sm:$0xf]
    %v1267 = vld [vmem:[#allocation10 + $0x7c] sm:$0xf]
    %v1268 = vpack.c.bf16 %v1234, %v1234
    %v1269 = vpack.c.bf16 %v1235, %v1235
    %v1270 = vld [vmem:[%s12] sm:$0x1]
    %v1272 = vlaneseq
    %v1273 = vshrl.u32 %v1272, 7
    %v1274 = vsub.s32 0, %v1273
    %v1275 = vrot.slane %v1270, %v1274
    %v1309 = vunpack.c.l.b16 %v1236
    %v1310 = vunpack.c.l.b16 %v1237
    %v1311 = vunpack.c.l.b16 %v1238
    %v1312 = vunpack.c.l.b16 %v1239
    %v1313 = vunpack.c.l.b16 %v1240
    %v1314 = vunpack.c.l.b16 %v1241
    %v1315 = vunpack.c.l.b16 %v1242
    %v1316 = vunpack.c.l.b16 %v1243
    %v1317 = vunpack.c.l.b16 %v1244
    %v1318 = vunpack.c.l.b16 %v1245
    %v1319 = vunpack.c.l.b16 %v1246
    %v1320 = vunpack.c.l.b16 %v1247
    %v1321 = vunpack.c.l.b16 %v1248
    %v1322 = vunpack.c.l.b16 %v1249
    %v1323 = vunpack.c.l.b16 %v1250
    %v1324 = vunpack.c.l.b16 %v1251
    %v1325 = vunpack.c.l.b16 %v1252
    %v1326 = vunpack.c.l.b16 %v1253
    %v1327 = vunpack.c.l.b16 %v1254
    %v1328 = vunpack.c.l.b16 %v1255
    %v1329 = vunpack.c.l.b16 %v1256
    %v1330 = vunpack.c.l.b16 %v1257
    %v1331 = vunpack.c.l.b16 %v1258
    %v1332 = vunpack.c.l.b16 %v1259
    %v1333 = vunpack.c.l.b16 %v1260
    %v1334 = vunpack.c.l.b16 %v1261
    %v1335 = vunpack.c.l.b16 %v1262
    %v1336 = vunpack.c.l.b16 %v1263
    %v1337 = vunpack.c.l.b16 %v1264
    %v1338 = vunpack.c.l.b16 %v1265
    %v1339 = vunpack.c.l.b16 %v1266
    %v1340 = vunpack.c.l.b16 %v1267
    %v1341 = vpack.c.b16 %v1310, %v1309
    %v1342 = vpack.c.b16 %v1312, %v1311
    %v1343 = vpack.c.b16 %v1314, %v1313
    %v1344 = vpack.c.b16 %v1316, %v1315
    %v1345 = vpack.c.b16 %v1318, %v1317
    %v1346 = vpack.c.b16 %v1320, %v1319
    %v1347 = vpack.c.b16 %v1322, %v1321
    %v1348 = vpack.c.b16 %v1324, %v1323
    %v1349 = vpack.c.b16 %v1326, %v1325
    %v1350 = vpack.c.b16 %v1328, %v1327
    %v1351 = vpack.c.b16 %v1330, %v1329
    %v1352 = vpack.c.b16 %v1332, %v1331
    %v1353 = vpack.c.b16 %v1334, %v1333
    %v1354 = vpack.c.b16 %v1336, %v1335
    %v1355 = vpack.c.b16 %v1338, %v1337
    %v1356 = vpack.c.b16 %v1340, %v1339
    %1373 = vmatprep.subr.bf16.mxu0 0
    %1374 = vmatpush1.bf16.msra.mxu0 %v1341
    %1375 = vmatprep.subr.bf16.mxu0 0
    %1376 = vmatpush1.bf16.msra.mxu0 %v1342
    %1377 = vmatprep.subr.bf16.mxu0 0
    %1378 = vmatpush1.bf16.msra.mxu0 %v1343
    %1379 = vmatprep.subr.bf16.mxu0 0
    %1380 = vmatpush1.bf16.msra.mxu0 %v1344
    %1381 = vmatprep.subr.bf16.mxu0 0
    %1382 = vmatpush1.bf16.msra.mxu0 %v1345
    %1383 = vmatprep.subr.bf16.mxu0 0
    %1384 = vmatpush1.bf16.msra.mxu0 %v1346
    %1385 = vmatprep.subr.bf16.mxu0 0
    %1386 = vmatpush1.bf16.msra.mxu0 %v1347
    %1387 = vmatprep.subr.bf16.mxu0 0
    %1388 = vmatpush1.bf16.msra.mxu0 %v1348
    %1389 = vmatprep.subr.bf16.mxu0 0
    %1390 = vmatpush1.bf16.msra.mxu0 %v1349
    %1391 = vmatprep.subr.bf16.mxu0 0
    %1392 = vmatpush1.bf16.msra.mxu0 %v1350
    %1393 = vmatprep.subr.bf16.mxu0 0
    %1394 = vmatpush1.bf16.msra.mxu0 %v1351
    %1395 = vmatprep.subr.bf16.mxu0 0
    %1396 = vmatpush1.bf16.msra.mxu0 %v1352
    %1397 = vmatprep.subr.bf16.mxu0 0
    %1398 = vmatpush1.bf16.msra.mxu0 %v1353
    %1399 = vmatprep.subr.bf16.mxu0 0
    %1400 = vmatpush1.bf16.msra.mxu0 %v1354
    %1401 = vmatprep.subr.bf16.mxu0 0
    %1402 = vmatpush1.bf16.msra.mxu0 %v1355
    %1403 = vmatprep.subr.bf16.mxu0 0
    %1404 = vmatpush1.bf16.msra.mxu0 %v1356
    %1405 = vmatprep.mubr.bf16.mxu0 %v1269
    %1406 = vmatmul.mubr.bf16.gmra.mrb[0].mxu0 %v1268
    %v1407 = vpop.f32.mrb[0].mxu0
    %v1408 = vadd.f32 %v1275, %v1407
    %v1409 = vpop.f32.mrb[0].mxu0
    %v1410 = vpop.f32.mrb[0].mxu0
    %v1411 = vpop.f32.mrb[0].mxu0
    %1412 = vdwg.mxu0
    %v1413 = vtanh.pop %v1408
    %1414 = vst [vmem:[#allocation11] sm:$0xff] %v1413
    // Predicated region
    $region74: #{tpu_custom_call.1} parent=1 // pred_check
      _
    $region75: #{tpu_custom_call.1} parent=1 // pred_check_branch
      %1416 = sbr.rel (0) target = $region77
    $region76: #{tpu_custom_call.1} parent=1 // pred_region
      %s1418 = ssub.s32 128, 128
      %1419 = vsyncadd [#allocation4], %s1418
      %s1421 = sshll.u32 [#allocation11], 4
      %s1422 = int_to_ptr.vmem [resolvable:$true] %s1421
      %1424 = dma.vmem_to_hbm [thread:$0]  %s1422, 128, %s13, [#allocation4]
    $region77: #{tpu_custom_call.1} parent=1 // pred_fallthru
      _
    // Predicated region
    $region78: #{tpu_custom_call.1} parent=1 // pred_check
      _
    $region79: #{tpu_custom_call.1} parent=1 // pred_check_branch
      %1426 = sbr.rel (0) target = $region81
    $region80: #{tpu_custom_call.1} parent=1 // pred_region
      %1427 = dma.done [#allocation4], 128
    $region81: #{tpu_custom_call.1} parent=1 // pred_fallthru
      _
    %1428 = vsyncpa [#allocation3], 1
    %1429 = vsyncpa [#allocation6], 1
    %1430 = vsyncpa [#allocation9], 1
    %1431 = vsyncpa [#allocation4], 1

// kernel: tpu_custom_call.1
$region0: #{tpu_custom_call.1}
  #allocation0 [shape = 'u32[]', space=smem, size = 0x4, offset = 0x4, fixed_abs, tag = 'smem constant byte address 0x4 - core index']
  #allocation1 [shape = 'u32[144,128]{1,0:T(1,128)}', space=vmem, size = 0x12000, scoped, tag = 'internal scratch']
  %s0 = inlined_call_operand.vmem [shape: f32[8,4], index: 0, kind: input, shape index: {}]
  %s1 = inlined_call_operand.vmem [shape: f32[4,256], index: 1, kind: input, shape index: {}]
  %s2 = inlined_call_operand.vmem [shape: f32[1,256], index: 2, kind: input, shape index: {}]
  %s3 = inlined_call_operand.hbm [shape: bf16[256,256], index: 3, kind: input, shape index: {}]
  %s4 = inlined_call_operand.vmem [shape: f32[1,256], index: 4, kind: input, shape index: {}]
  %s5 = inlined_call_operand.hbm [shape: bf16[256,256], index: 5, kind: input, shape index: {}]
  %s6 = inlined_call_operand.vmem [shape: f32[1,256], index: 6, kind: input, shape index: {}]
  %s7 = inlined_call_operand.hbm [shape: bf16[256,256], index: 7, kind: input, shape index: {}]
  %s8 = inlined_call_operand.vmem [shape: f32[1,256], index: 8, kind: input, shape index: {}]
  %s9 = inlined_call_operand.hbm [shape: bf16[256,256], index: 9, kind: input, shape index: {}]
  %s10 = inlined_call_operand.vmem [shape: f32[1,256], index: 10, kind: input, shape index: {}]
  %s11 = inlined_call_operand.hbm [shape: bf16[256,128], index: 11, kind: input, shape index: {}]
  %s12 = inlined_call_operand.vmem [shape: f32[1,128], index: 12, kind: input, shape index: {}]
  %s13 = inlined_call_operand.hbm [shape: f32[8,128], index: 13, kind: output, shape index: {}]
  %s14 = sld [smem:[#allocation0]]
  $region82: #{tpu_custom_call.1} parent=0
    _
  %s16 = ssub.s32 1, %s14
  %s17 = scalar_select 0, %s16, %s14
  $region1: #{tpu_custom_call.1} parent=0
    #allocation2 [shape = 'u8[131072]{0}', space=vmem, size = 0x20000, scoped, tag = 'input window, operand 3, single buffered']
    #allocation3 [shape = 's32[1]{0}', space=sflag, size = 0x4, scoped, tag = 'scoped memory for tpu_custom_call.1']
    #allocation4 [shape = 's32[1]{0}', space=sflag, size = 0x4, scoped, tag = 'scoped memory for tpu_custom_call.1']
    #allocation5 [shape = 'u8[131072]{0}', space=vmem, size = 0x20000, scoped, tag = 'input window, operand 5, single buffered']
    #allocation6 [shape = 's32[1]{0}', space=sflag, size = 0x4, scoped, tag = 'scoped memory for tpu_custom_call.1']
    #allocation7 [shape = 'u8[131072]{0}', space=vmem, size = 0x20000, scoped, tag = 'input window, operand 7, single buffered']
    #allocation8 [shape = 'u8[131072]{0}', space=vmem, size = 0x20000, scoped, tag = 'input window, operand 9, single buffered']
    #allocation9 [shape = 's32[1]{0}', space=sflag, size = 0x4, scoped, tag = 'scoped memory for tpu_custom_call.1']
    #allocation10 [shape = 'u8[65536]{0}', space=vmem, size = 0x10000, scoped, tag = 'input window, operand 11, single buffered']
    #allocation11 [shape = 'u8[4096]{0}', space=vmem, size = 0x1000, scoped, tag = 'output window, operand 0, single buffered']
    %18 = vsyncpa [#allocation3], 0
    %19 = vsyncpa [#allocation6], 0
    %20 = vsyncpa [#allocation9], 0
    %21 = vsyncpa [#allocation4], 0
    // Predicated region
    $region2: #{tpu_custom_call.1} parent=1 // pred_check
      _
    $region3: #{tpu_custom_call.1} parent=1 // pred_check_branch
      %23 = sbr.rel (0) target = $region5
    $region4: #{tpu_custom_call.1} parent=1 // pred_region
      _
    $region5: #{tpu_custom_call.1} parent=1 // pred_fallthru
      _
    // Predicated region
    $region6: #{tpu_custom_call.1} parent=1 // pred_check
      _
    $region7: #{tpu_custom_call.1} parent=1 // pred_check_branch
      %25 = sbr.rel (0) target = $region9
    $region8: #{tpu_custom_call.1} parent=1 // pred_region
      _
    $region9: #{tpu_custom_call.1} parent=1 // pred_fallthru
      _
    // Predicated region
    $region10: #{tpu_custom_call.1} parent=1 // pred_check
      _
    $region11: #{tpu_custom_call.1} parent=1 // pred_check_branch
      %27 = sbr.rel (0) target = $region13
    $region12: #{tpu_custom_call.1} parent=1 // pred_region
      _
    $region13: #{tpu_custom_call.1} parent=1 // pred_fallthru
      _
    // Predicated region
    $region14: #{tpu_custom_call.1} parent=1 // pred_check
      _
    $region15: #{tpu_custom_call.1} parent=1 // pred_check_branch
      %29 = sbr.rel (0) target = $region17
    $region16: #{tpu_custom_call.1} parent=1 // pred_region
      %s31 = ssub.s32 4096, 4096
      %32 = vsyncadd [#allocation3], %s31
      %s33 = sshll.u32 [#allocation2], 4
      %s34 = int_to_ptr.vmem [resolvable:$true] %s33
      %39 = dma.hbm_to_vmem [thread:$0]  %s3, 4096, %s34, [#allocation3], 128, 128, 8
    $region17: #{tpu_custom_call.1} parent=1 // pred_fallthru
      _
    // Predicated region
    $region18: #{tpu_custom_call.1} parent=1 // pred_check
      _
    $region19: #{tpu_custom_call.1} parent=1 // pred_check_branch
      %41 = sbr.rel (0) target = $region21
    $region20: #{tpu_custom_call.1} parent=1 // pred_region
      _
    $region21: #{tpu_custom_call.1} parent=1 // pred_fallthru
      _
    // Predicated region
    $region22: #{tpu_custom_call.1} parent=1 // pred_check
      _
    $region23: #{tpu_custom_call.1} parent=1 // pred_check_branch
      %43 = sbr.rel (0) target = $region25
    $region24: #{tpu_custom_call.1} parent=1 // pred_region
      %s45 = ssub.s32 4096, 4096
      %46 = vsyncadd [#allocation6], %s45
      %s47 = sshll.u32 [#allocation5], 4
      %s48 = int_to_ptr.vmem [resolvable:$true] %s47
      %53 = dma.hbm_to_vmem [thread:$0]  %s5, 4096, %s48, [#allocation6], 128, 128, 8
    $region25: #{tpu_custom_call.1} parent=1 // pred_fallthru
      _
    // Predicated region
    $region26: #{tpu_custom_call.1} parent=1 // pred_check
      _
    $region27: #{tpu_custom_call.1} parent=1 // pred_check_branch
      %55 = sbr.rel (0) target = $region29
    $region28: #{tpu_custom_call.1} parent=1 // pred_region
      _
    $region29: #{tpu_custom_call.1} parent=1 // pred_fallthru
      _
    // Predicated region
    $region30: #{tpu_custom_call.1} parent=1 // pred_check
      _
    $region31: #{tpu_custom_call.1} parent=1 // pred_check_branch
      %57 = sbr.rel (0) target = $region33
    $region32: #{tpu_custom_call.1} parent=1 // pred_region
      %s59 = ssub.s32 4096, 4096
      %60 = vsyncadd [#allocation6], %s59
      %s61 = sshll.u32 [#allocation7], 4
      %s62 = int_to_ptr.vmem [resolvable:$true] %s61
      %67 = dma.hbm_to_vmem [thread:$0]  %s7, 4096, %s62, [#allocation6], 128, 128, 8
    $region33: #{tpu_custom_call.1} parent=1 // pred_fallthru
      _
    // Predicated region
    $region34: #{tpu_custom_call.1} parent=1 // pred_check
      _
    $region35: #{tpu_custom_call.1} parent=1 // pred_check_branch
      %69 = sbr.rel (0) target = $region37
    $region36: #{tpu_custom_call.1} parent=1 // pred_region
      _
    $region37: #{tpu_custom_call.1} parent=1 // pred_fallthru
      _
    // Predicated region
    $region38: #{tpu_custom_call.1} parent=1 // pred_check
      _
    $region39: #{tpu_custom_call.1} parent=1 // pred_check_branch
      %71 = sbr.rel (0) target = $region41
    $region40: #{tpu_custom_call.1} parent=1 // pred_region
      %s73 = ssub.s32 4096, 4096
      %74 = vsyncadd [#allocation9], %s73
      %s75 = sshll.u32 [#allocation8], 4
      %s76 = int_to_ptr.vmem [resolvable:$true] %s75
      %81 = dma.hbm_to_vmem [thread:$0]  %s9, 4096, %s76, [#allocation9], 128, 128, 8
    $region41: #{tpu_custom_call.1} parent=1 // pred_fallthru
      _
    // Predicated region
    $region42: #{tpu_custom_call.1} parent=1 // pred_check
      _
    $region43: #{tpu_custom_call.1} parent=1 // pred_check_branch
      %83 = sbr.rel (0) target = $region45
    $region44: #{tpu_custom_call.1} parent=1 // pred_region
      _
    $region45: #{tpu_custom_call.1} parent=1 // pred_fallthru
      _
    // Predicated region
    $region46: #{tpu_custom_call.1} parent=1 // pred_check
      _
    $region47: #{tpu_custom_call.1} parent=1 // pred_check_branch
      %85 = sbr.rel (0) target = $region49
    $region48: #{tpu_custom_call.1} parent=1 // pred_region
      %s87 = ssub.s32 2048, 2048
      %88 = vsyncadd [#allocation9], %s87
      %s89 = sshll.u32 [#allocation10], 4
      %s90 = int_to_ptr.vmem [resolvable:$true] %s89
      %95 = dma.hbm_to_vmem [thread:$0]  %s11, 2048, %s90, [#allocation9], 64, 64, 4
    $region49: #{tpu_custom_call.1} parent=1 // pred_fallthru
      _
    // Predicated region
    $region50: #{tpu_custom_call.1} parent=1 // pred_check
      _
    $region51: #{tpu_custom_call.1} parent=1 // pred_check_branch
      %97 = sbr.rel (0) target = $region53
    $region52: #{tpu_custom_call.1} parent=1 // pred_region
      _
    $region53: #{tpu_custom_call.1} parent=1 // pred_fallthru
      _
    // Predicated region
    $region54: #{tpu_custom_call.1} parent=1 // pred_check
      _
    $region55: #{tpu_custom_call.1} parent=1 // pred_check_branch
      %99 = sbr.rel (0) target = $region57
    $region56: #{tpu_custom_call.1} parent=1 // pred_region
      %100 = dma.done [#allocation3], 4096
    $region57: #{tpu_custom_call.1} parent=1 // pred_fallthru
      _
    // Predicated region
    $region58: #{tpu_custom_call.1} parent=1 // pred_check
      _
    $region59: #{tpu_custom_call.1} parent=1 // pred_check_branch
      %102 = sbr.rel (0) target = $region61
    $region60: #{tpu_custom_call.1} parent=1 // pred_region
      %103 = dma.done [#allocation6], 4096
    $region61: #{tpu_custom_call.1} parent=1 // pred_fallthru
      _
    // Predicated region
    $region62: #{tpu_custom_call.1} parent=1 // pred_check
      _
    $region63: #{tpu_custom_call.1} parent=1 // pred_check_branch
      %105 = sbr.rel (0) target = $region65
    $region64: #{tpu_custom_call.1} parent=1 // pred_region
      %106 = dma.done [#allocation6], 4096
    $region65: #{tpu_custom_call.1} parent=1 // pred_fallthru
      _
    // Predicated region
    $region66: #{tpu_custom_call.1} parent=1 // pred_check
      _
    $region67: #{tpu_custom_call.1} parent=1 // pred_check_branch
      %108 = sbr.rel (0) target = $region69
    $region68: #{tpu_custom_call.1} parent=1 // pred_region
      %109 = dma.done [#allocation9], 4096
    $region69: #{tpu_custom_call.1} parent=1 // pred_fallthru
      _
    // Predicated region
    $region70: #{tpu_custom_call.1} parent=1 // pred_check
      _
    $region71: #{tpu_custom_call.1} parent=1 // pred_check_branch
      %111 = sbr.rel (0) target = $region73
    $region72: #{tpu_custom_call.1} parent=1 // pred_region
      %112 = dma.done [#allocation9], 2048
    $region73: #{tpu_custom_call.1} parent=1 // pred_fallthru
      _
    %v114 = vld [vmem:[%s0] sm:$0xff]
    %v115 = vld [vmem:[%s1] sm:$0xff]
    %117 = vset.pattern.permute.xlu0 0
    %118 = vperm.xlu0 %117, %v114
    %v119 = vpop.permute.xlu0 %118
    %v122 = vlaneseq
    %v123 = vshrl.u32 %v122, 7
    %v124 = vsub.s32 0, %v123
    %v125 = vrot.slane %v115, %v124
    %v126 = vlaneseq
    %v127 = vshrl.u32 %v126, 7
    %v128 = vsub.s32 4, %v127
    %v129 = vrot.slane %v115, %v128
    %v132 = vlaneseq
    %v133 = vshrl.u32 %v132, 7
    %v134 = vsub.s32 0, %v133
    %v135 = vrot.slane %v125, %v134
    %v136 = vlaneseq
    %v137 = vshrl.u32 %v136, 7
    %v138 = vsub.s32 0, %v137
    %v139 = vrot.slane %v129, %v138
    %v140 = vmul.f32 %v119, %v135
    %v141 = vmul.f32 %v119, %v139
    %142 = vset.pattern.permute.xlu0 1
    %143 = vperm.xlu0 %142, %v114
    %v144 = vpop.permute.xlu0 %143
    %v146 = vlaneseq
    %v147 = vshrl.u32 %v146, 7
    %v148 = vsub.s32 1, %v147
    %v149 = vrot.slane %v115, %v148
    %v150 = vlaneseq
    %v151 = vshrl.u32 %v150, 7
    %v152 = vsub.s32 5, %v151
    %v153 = vrot.slane %v115, %v152
    %v156 = vlaneseq
    %v157 = vshrl.u32 %v156, 7
    %v158 = vsub.s32 1, %v157
    %v159 = vrot.slane %v149, %v158
    %v160 = vlaneseq
    %v161 = vshrl.u32 %v160, 7
    %v162 = vsub.s32 1, %v161
    %v163 = vrot.slane %v153, %v162
    %v164 = vmul.f32 %v144, %v159
    %v165 = vmul.f32 %v144, %v163
    %v166 = vadd.f32 %v140, %v164
    %v167 = vadd.f32 %v141, %v165
    %168 = vset.pattern.permute.xlu0 2
    %169 = vperm.xlu0 %168, %v114
    %v170 = vpop.permute.xlu0 %169
    %v172 = vlaneseq
    %v173 = vshrl.u32 %v172, 7
    %v174 = vsub.s32 2, %v173
    %v175 = vrot.slane %v115, %v174
    %v176 = vlaneseq
    %v177 = vshrl.u32 %v176, 7
    %v178 = vsub.s32 6, %v177
    %v179 = vrot.slane %v115, %v178
    %v182 = vlaneseq
    %v183 = vshrl.u32 %v182, 7
    %v184 = vsub.s32 2, %v183
    %v185 = vrot.slane %v175, %v184
    %v186 = vlaneseq
    %v187 = vshrl.u32 %v186, 7
    %v188 = vsub.s32 2, %v187
    %v189 = vrot.slane %v179, %v188
    %v190 = vmul.f32 %v170, %v185
    %v191 = vmul.f32 %v170, %v189
    %v192 = vadd.f32 %v166, %v190
    %v193 = vadd.f32 %v167, %v191
    %194 = vset.pattern.permute.xlu0 3
    %195 = vperm.xlu0 %194, %v114
    %v196 = vpop.permute.xlu0 %195
    %v198 = vlaneseq
    %v199 = vshrl.u32 %v198, 7
    %v200 = vsub.s32 3, %v199
    %v201 = vrot.slane %v115, %v200
    %v202 = vlaneseq
    %v203 = vshrl.u32 %v202, 7
    %v204 = vsub.s32 7, %v203
    %v205 = vrot.slane %v115, %v204
    %v208 = vlaneseq
    %v209 = vshrl.u32 %v208, 7
    %v210 = vsub.s32 3, %v209
    %v211 = vrot.slane %v201, %v210
    %v212 = vlaneseq
    %v213 = vshrl.u32 %v212, 7
    %v214 = vsub.s32 3, %v213
    %v215 = vrot.slane %v205, %v214
    %v216 = vmul.f32 %v196, %v211
    %v217 = vmul.f32 %v196, %v215
    %v218 = vadd.f32 %v192, %v216
    %v219 = vadd.f32 %v193, %v217
    %v220 = vld [vmem:[%s2] sm:$0x3]
    %v222 = vlaneseq
    %v223 = vshrl.u32 %v222, 7
    %v224 = vsub.s32 0, %v223
    %v225 = vrot.slane %v220, %v224
    %v226 = vlaneseq
    %v227 = vshrl.u32 %v226, 7
    %v228 = vsub.s32 1, %v227
    %v229 = vrot.slane %v220, %v228
    %v232 = vadd.f32 %v218, %v225
    %v233 = vadd.f32 %v219, %v229
    %v234 = vtanh.pop %v232
    %v235 = vtanh.pop %v233
    %v236 = vld [vmem:[#allocation2] sm:$0xff]
    %v237 = vld [vmem:[#allocation2 + $0x8] sm:$0xff]
    %v238 = vld [vmem:[#allocation2 + $0x10] sm:$0xff]
    %v239 = vld [vmem:[#allocation2 + $0x18] sm:$0xff]
    %v240 = vld [vmem:[#allocation2 + $0x20] sm:$0xff]
    %v241 = vld [vmem:[#allocation2 + $0x28] sm:$0xff]
    %v242 = vld [vmem:[#allocation2 + $0x30] sm:$0xff]
    %v243 = vld [vmem:[#allocation2 + $0x38] sm:$0xff]
    %v244 = vld [vmem:[#allocation2 + $0x40] sm:$0xff]
    %v245 = vld [vmem:[#allocation2 + $0x48] sm:$0xff]
    %v246 = vld [vmem:[#allocation2 + $0x50] sm:$0xff]
    %v247 = vld [vmem:[#allocation2 + $0x58] sm:$0xff]
    %v248 = vld [vmem:[#allocation2 + $0x60] sm:$0xff]
    %v249 = vld [vmem:[#allocation2 + $0x68] sm:$0xff]
    %v250 = vld [vmem:[#allocation2 + $0x70] sm:$0xff]
    %v251 = vld [vmem:[#allocation2 + $0x78] sm:$0xff]
    %v252 = vld [vmem:[#allocation2 + $0x80] sm:$0xff]
    %v253 = vld [vmem:[#allocation2 + $0x88] sm:$0xff]
    %v254 = vld [vmem:[#allocation2 + $0x90] sm:$0xff]
    %v255 = vld [vmem:[#allocation2 + $0x98] sm:$0xff]
    %v256 = vld [vmem:[#allocation2 + $0xa0] sm:$0xff]
    %v257 = vld [vmem:[#allocation2 + $0xa8] sm:$0xff]
    %v258 = vld [vmem:[#allocation2 + $0xb0] sm:$0xff]
    %v259 = vld [vmem:[#allocation2 + $0xb8] sm:$0xff]
    %v260 = vld [vmem:[#allocation2 + $0xc0] sm:$0xff]
    %v261 = vld [vmem:[#allocation2 + $0xc8] sm:$0xff]
    %v262 = vld [vmem:[#allocation2 + $0xd0] sm:$0xff]
    %v263 = vld [vmem:[#allocation2 + $0xd8] sm:$0xff]
    %v264 = vld [vmem:[#allocation2 + $0xe0] sm:$0xff]
    %v265 = vld [vmem:[#allocation2 + $0xe8] sm:$0xff]
    %v266 = vld [vmem:[#allocation2 + $0xf0] sm:$0xff]
    %v267 = vld [vmem:[#allocation2 + $0xf8] sm:$0xff]
    %v268 = vpack.c.bf16 %v234, %v234
    %v269 = vpack.c.bf16 %v235, %v235
    %v270 = vld [vmem:[%s4] sm:$0x3]
    %v272 = vlaneseq
    %v273 = vshrl.u32 %v272, 7
    %v274 = vsub.s32 0, %v273
    %v275 = vrot.slane %v270, %v274
    %v276 = vlaneseq
    %v277 = vshrl.u32 %v276, 7
    %v278 = vsub.s32 1, %v277
    %v279 = vrot.slane %v270, %v278
    %v314 = vunpack.c.l.b16 %v236
    %v315 = vunpack.c.h.b16 %v236
    %v316 = vunpack.c.l.b16 %v237
    %v317 = vunpack.c.h.b16 %v237
    %v318 = vunpack.c.l.b16 %v238
    %v319 = vunpack.c.h.b16 %v238
    %v320 = vunpack.c.l.b16 %v239
    %v321 = vunpack.c.h.b16 %v239
    %v322 = vunpack.c.l.b16 %v240
    %v323 = vunpack.c.h.b16 %v240
    %v324 = vunpack.c.l.b16 %v241
    %v325 = vunpack.c.h.b16 %v241
    %v326 = vunpack.c.l.b16 %v242
    %v327 = vunpack.c.h.b16 %v242
    %v328 = vunpack.c.l.b16 %v243
    %v329 = vunpack.c.h.b16 %v243
    %v330 = vunpack.c.l.b16 %v244
    %v331 = vunpack.c.h.b16 %v244
    %v332 = vunpack.c.l.b16 %v245
    %v333 = vunpack.c.h.b16 %v245
    %v334 = vunpack.c.l.b16 %v246
    %v335 = vunpack.c.h.b16 %v246
    %v336 = vunpack.c.l.b16 %v247
    %v337 = vunpack.c.h.b16 %v247
    %v338 = vunpack.c.l.b16 %v248
    %v339 = vunpack.c.h.b16 %v248
    %v340 = vunpack.c.l.b16 %v249
    %v341 = vunpack.c.h.b16 %v249
    %v342 = vunpack.c.l.b16 %v250
    %v343 = vunpack.c.h.b16 %v250
    %v344 = vunpack.c.l.b16 %v251
    %v345 = vunpack.c.h.b16 %v251
    %v346 = vunpack.c.l.b16 %v252
    %v347 = vunpack.c.h.b16 %v252
    %v348 = vunpack.c.l.b16 %v253
    %v349 = vunpack.c.h.b16 %v253
    %v350 = vunpack.c.l.b16 %v254
    %v351 = vunpack.c.h.b16 %v254
    %v352 = vunpack.c.l.b16 %v255
    %v353 = vunpack.c.h.b16 %v255
    %v354 = vunpack.c.l.b16 %v256
    %v355 = vunpack.c.h.b16 %v256
    %v356 = vunpack.c.l.b16 %v257
    %v357 = vunpack.c.h.b16 %v257
    %v358 = vunpack.c.l.b16 %v258
    %v359 = vunpack.c.h.b16 %v258
    %v360 = vunpack.c.l.b16 %v259
    %v361 = vunpack.c.h.b16 %v259
    %v362 = vunpack.c.l.b16 %v260
    %v363 = vunpack.c.h.b16 %v260
    %v364 = vunpack.c.l.b16 %v261
    %v365 = vunpack.c.h.b16 %v261
    %v366 = vunpack.c.l.b16 %v262
    %v367 = vunpack.c.h.b16 %v262
    %v368 = vunpack.c.l.b16 %v263
    %v369 = vunpack.c.h.b16 %v263
    %v370 = vunpack.c.l.b16 %v264
    %v371 = vunpack.c.h.b16 %v264
    %v372 = vunpack.c.l.b16 %v265
    %v373 = vunpack.c.h.b16 %v265
    %v374 = vunpack.c.l.b16 %v266
    %v375 = vunpack.c.h.b16 %v266
    %v376 = vunpack.c.l.b16 %v267
    %v377 = vunpack.c.h.b16 %v267
    %v378 = vpack.c.b16 %v316, %v314
    %v379 = vpack.c.b16 %v317, %v315
    %v380 = vpack.c.b16 %v320, %v318
    %v381 = vpack.c.b16 %v321, %v319
    %v382 = vpack.c.b16 %v324, %v322
    %v383 = vpack.c.b16 %v325, %v323
    %v384 = vpack.c.b16 %v328, %v326
    %v385 = vpack.c.b16 %v329, %v327
    %v386 = vpack.c.b16 %v332, %v330
    %v387 = vpack.c.b16 %v333, %v331
    %v388 = vpack.c.b16 %v336, %v334
    %v389 = vpack.c.b16 %v337, %v335
    %v390 = vpack.c.b16 %v340, %v338
    %v391 = vpack.c.b16 %v341, %v339
    %v392 = vpack.c.b16 %v344, %v342
    %v393 = vpack.c.b16 %v345, %v343
    %v394 = vpack.c.b16 %v348, %v346
    %v395 = vpack.c.b16 %v349, %v347
    %v396 = vpack.c.b16 %v352, %v350
    %v397 = vpack.c.b16 %v353, %v351
    %v398 = vpack.c.b16 %v356, %v354
    %v399 = vpack.c.b16 %v357, %v355
    %v400 = vpack.c.b16 %v360, %v358
    %v401 = vpack.c.b16 %v361, %v359
    %v402 = vpack.c.b16 %v364, %v362
    %v403 = vpack.c.b16 %v365, %v363
    %v404 = vpack.c.b16 %v368, %v366
    %v405 = vpack.c.b16 %v369, %v367
    %v406 = vpack.c.b16 %v372, %v370
    %v407 = vpack.c.b16 %v373, %v371
    %v408 = vpack.c.b16 %v376, %v374
    %v409 = vpack.c.b16 %v377, %v375
    %442 = vmatprep.subr.bf16.mxu0 %v379
    %443 = vmatpush1.bf16.msra.mxu0 %v378
    %444 = vmatprep.subr.bf16.mxu0 %v381
    %445 = vmatpush1.bf16.msra.mxu0 %v380
    %446 = vmatprep.subr.bf16.mxu0 %v383
    %447 = vmatpush1.bf16.msra.mxu0 %v382
    %448 = vmatprep.subr.bf16.mxu0 %v385
    %449 = vmatpush1.bf16.msra.mxu0 %v384
    %450 = vmatprep.subr.bf16.mxu0 %v387
    %451 = vmatpush1.bf16.msra.mxu0 %v386
    %452 = vmatprep.subr.bf16.mxu0 %v389
    %453 = vmatpush1.bf16.msra.mxu0 %v388
    %454 = vmatprep.subr.bf16.mxu0 %v391
    %455 = vmatpush1.bf16.msra.mxu0 %v390
    %456 = vmatprep.subr.bf16.mxu0 %v393
    %457 = vmatpush1.bf16.msra.mxu0 %v392
    %458 = vmatprep.subr.bf16.mxu0 %v395
    %459 = vmatpush1.bf16.msra.mxu0 %v394
    %460 = vmatprep.subr.bf16.mxu0 %v397
    %461 = vmatpush1.bf16.msra.mxu0 %v396
    %462 = vmatprep.subr.bf16.mxu0 %v399
    %463 = vmatpush1.bf16.msra.mxu0 %v398
    %464 = vmatprep.subr.bf16.mxu0 %v401
    %465 = vmatpush1.bf16.msra.mxu0 %v400
    %466 = vmatprep.subr.bf16.mxu0 %v403
    %467 = vmatpush1.bf16.msra.mxu0 %v402
    %468 = vmatprep.subr.bf16.mxu0 %v405
    %469 = vmatpush1.bf16.msra.mxu0 %v404
    %470 = vmatprep.subr.bf16.mxu0 %v407
    %471 = vmatpush1.bf16.msra.mxu0 %v406
    %472 = vmatprep.subr.bf16.mxu0 %v409
    %473 = vmatpush1.bf16.msra.mxu0 %v408
    %474 = vmatprep.mubr.bf16.mxu0 %v269
    %475 = vmatmul.mubr.bf16.gmra.mrb[0].mxu0 %v268
    %v476 = vpop.f32.mrb[0].mxu0
    %v477 = vadd.f32 %v275, %v476
    %v478 = vpop.f32.mrb[0].mxu0
    %v479 = vadd.f32 %v279, %v478
    %v480 = vpop.f32.mrb[0].mxu0
    %v481 = vpop.f32.mrb[0].mxu0
    %482 = vdwg.mxu0
    %v483 = vtanh.pop %v477
    %v484 = vtanh.pop %v479
    %v485 = vld [vmem:[#allocation5] sm:$0xff]
    %v486 = vld [vmem:[#allocation5 + $0x8] sm:$0xff]
    %v487 = vld [vmem:[#allocation5 + $0x10] sm:$0xff]
    %v488 = vld [vmem:[#allocation5 + $0x18] sm:$0xff]
    %v489 = vld [vmem:[#allocation5 + $0x20] sm:$0xff]
    %v490 = vld [vmem:[#allocation5 + $0x28] sm:$0xff]
    %v491 = vld [vmem:[#allocation5 + $0x30] sm:$0xff]
    %v492 = vld [vmem:[#allocation5 + $0x38] sm:$0xff]
    %v493 = vld [vmem:[#allocation5 + $0x40] sm:$0xff]
    %v494 = vld [vmem:[#allocation5 + $0x48] sm:$0xff]
    %v495 = vld [vmem:[#allocation5 + $0x50] sm:$0xff]
    %v496 = vld [vmem:[#allocation5 + $0x58] sm:$0xff]
    %v497 = vld [vmem:[#allocation5 + $0x60] sm:$0xff]
    %v498 = vld [vmem:[#allocation5 + $0x68] sm:$0xff]
    %v499 = vld [vmem:[#allocation5 + $0x70] sm:$0xff]
    %v500 = vld [vmem:[#allocation5 + $0x78] sm:$0xff]
    %v501 = vld [vmem:[#allocation5 + $0x80] sm:$0xff]
    %v502 = vld [vmem:[#allocation5 + $0x88] sm:$0xff]
    %v503 = vld [vmem:[#allocation5 + $0x90] sm:$0xff]
    %v504 = vld [vmem:[#allocation5 + $0x98] sm:$0xff]
    %v505 = vld [vmem:[#allocation5 + $0xa0] sm:$0xff]
    %v506 = vld [vmem:[#allocation5 + $0xa8] sm:$0xff]
    %v507 = vld [vmem:[#allocation5 + $0xb0] sm:$0xff]
    %v508 = vld [vmem:[#allocation5 + $0xb8] sm:$0xff]
    %v509 = vld [vmem:[#allocation5 + $0xc0] sm:$0xff]
    %v510 = vld [vmem:[#allocation5 + $0xc8] sm:$0xff]
    %v511 = vld [vmem:[#allocation5 + $0xd0] sm:$0xff]
    %v512 = vld [vmem:[#allocation5 + $0xd8] sm:$0xff]
    %v513 = vld [vmem:[#allocation5 + $0xe0] sm:$0xff]
    %v514 = vld [vmem:[#allocation5 + $0xe8] sm:$0xff]
    %v515 = vld [vmem:[#allocation5 + $0xf0] sm:$0xff]
    %v516 = vld [vmem:[#allocation5 + $0xf8] sm:$0xff]
    %v517 = vpack.c.bf16 %v483, %v483
    %v518 = vpack.c.bf16 %v484, %v484
    %v519 = vld [vmem:[%s6] sm:$0x3]
    %v521 = vlaneseq
    %v522 = vshrl.u32 %v521, 7
    %v523 = vsub.s32 0, %v522
    %v524 = vrot.slane %v519, %v523
    %v525 = vlaneseq
    %v526 = vshrl.u32 %v525, 7
    %v527 = vsub.s32 1, %v526
    %v528 = vrot.slane %v519, %v527
    %v563 = vunpack.c.l.b16 %v485
    %v564 = vunpack.c.h.b16 %v485
    %v565 = vunpack.c.l.b16 %v486
    %v566 = vunpack.c.h.b16 %v486
    %v567 = vunpack.c.l.b16 %v487
    %v568 = vunpack.c.h.b16 %v487
    %v569 = vunpack.c.l.b16 %v488
    %v570 = vunpack.c.h.b16 %v488
    %v571 = vunpack.c.l.b16 %v489
    %v572 = vunpack.c.h.b16 %v489
    %v573 = vunpack.c.l.b16 %v490
    %v574 = vunpack.c.h.b16 %v490
    %v575 = vunpack.c.l.b16 %v491
    %v576 = vunpack.c.h.b16 %v491
    %v577 = vunpack.c.l.b16 %v492
    %v578 = vunpack.c.h.b16 %v492
    %v579 = vunpack.c.l.b16 %v493
    %v580 = vunpack.c.h.b16 %v493
    %v581 = vunpack.c.l.b16 %v494
    %v582 = vunpack.c.h.b16 %v494
    %v583 = vunpack.c.l.b16 %v495
    %v584 = vunpack.c.h.b16 %v495
    %v585 = vunpack.c.l.b16 %v496
    %v586 = vunpack.c.h.b16 %v496
    %v587 = vunpack.c.l.b16 %v497
    %v588 = vunpack.c.h.b16 %v497
    %v589 = vunpack.c.l.b16 %v498
    %v590 = vunpack.c.h.b16 %v498
    %v591 = vunpack.c.l.b16 %v499
    %v592 = vunpack.c.h.b16 %v499
    %v593 = vunpack.c.l.b16 %v500
    %v594 = vunpack.c.h.b16 %v500
    %v595 = vunpack.c.l.b16 %v501
    %v596 = vunpack.c.h.b16 %v501
    %v597 = vunpack.c.l.b16 %v502
    %v598 = vunpack.c.h.b16 %v502
    %v599 = vunpack.c.l.b16 %v503
    %v600 = vunpack.c.h.b16 %v503
    %v601 = vunpack.c.l.b16 %v504
    %v602 = vunpack.c.h.b16 %v504
    %v603 = vunpack.c.l.b16 %v505
    %v604 = vunpack.c.h.b16 %v505
    %v605 = vunpack.c.l.b16 %v506
    %v606 = vunpack.c.h.b16 %v506
    %v607 = vunpack.c.l.b16 %v507
    %v608 = vunpack.c.h.b16 %v507
    %v609 = vunpack.c.l.b16 %v508
    %v610 = vunpack.c.h.b16 %v508
    %v611 = vunpack.c.l.b16 %v509
    %v612 = vunpack.c.h.b16 %v509
    %v613 = vunpack.c.l.b16 %v510
    %v614 = vunpack.c.h.b16 %v510
    %v615 = vunpack.c.l.b16 %v511
    %v616 = vunpack.c.h.b16 %v511
    %v617 = vunpack.c.l.b16 %v512
    %v618 = vunpack.c.h.b16 %v512
    %v619 = vunpack.c.l.b16 %v513
    %v620 = vunpack.c.h.b16 %v513
    %v621 = vunpack.c.l.b16 %v514
    %v622 = vunpack.c.h.b16 %v514
    %v623 = vunpack.c.l.b16 %v515
    %v624 = vunpack.c.h.b16 %v515
    %v625 = vunpack.c.l.b16 %v516
    %v626 = vunpack.c.h.b16 %v516
    %v627 = vpack.c.b16 %v565, %v563
    %v628 = vpack.c.b16 %v566, %v564
    %v629 = vpack.c.b16 %v569, %v567
    %v630 = vpack.c.b16 %v570, %v568
    %v631 = vpack.c.b16 %v573, %v571
    %v632 = vpack.c.b16 %v574, %v572
    %v633 = vpack.c.b16 %v577, %v575
    %v634 = vpack.c.b16 %v578, %v576
    %v635 = vpack.c.b16 %v581, %v579
    %v636 = vpack.c.b16 %v582, %v580
    %v637 = vpack.c.b16 %v585, %v583
    %v638 = vpack.c.b16 %v586, %v584
    %v639 = vpack.c.b16 %v589, %v587
    %v640 = vpack.c.b16 %v590, %v588
    %v641 = vpack.c.b16 %v593, %v591
    %v642 = vpack.c.b16 %v594, %v592
    %v643 = vpack.c.b16 %v597, %v595
    %v644 = vpack.c.b16 %v598, %v596
    %v645 = vpack.c.b16 %v601, %v599
    %v646 = vpack.c.b16 %v602, %v600
    %v647 = vpack.c.b16 %v605, %v603
    %v648 = vpack.c.b16 %v606, %v604
    %v649 = vpack.c.b16 %v609, %v607
    %v650 = vpack.c.b16 %v610, %v608
    %v651 = vpack.c.b16 %v613, %v611
    %v652 = vpack.c.b16 %v614, %v612
    %v653 = vpack.c.b16 %v617, %v615
    %v654 = vpack.c.b16 %v618, %v616
    %v655 = vpack.c.b16 %v621, %v619
    %v656 = vpack.c.b16 %v622, %v620
    %v657 = vpack.c.b16 %v625, %v623
    %v658 = vpack.c.b16 %v626, %v624
    %691 = vmatprep.subr.bf16.mxu0 %v628
    %692 = vmatpush1.bf16.msra.mxu0 %v627
    %693 = vmatprep.subr.bf16.mxu0 %v630
    %694 = vmatpush1.bf16.msra.mxu0 %v629
    %695 = vmatprep.subr.bf16.mxu0 %v632
    %696 = vmatpush1.bf16.msra.mxu0 %v631
    %697 = vmatprep.subr.bf16.mxu0 %v634
    %698 = vmatpush1.bf16.msra.mxu0 %v633
    %699 = vmatprep.subr.bf16.mxu0 %v636
    %700 = vmatpush1.bf16.msra.mxu0 %v635
    %701 = vmatprep.subr.bf16.mxu0 %v638
    %702 = vmatpush1.bf16.msra.mxu0 %v637
    %703 = vmatprep.subr.bf16.mxu0 %v640
    %704 = vmatpush1.bf16.msra.mxu0 %v639
    %705 = vmatprep.subr.bf16.mxu0 %v642
    %706 = vmatpush1.bf16.msra.mxu0 %v641
    %707 = vmatprep.subr.bf16.mxu0 %v644
    %708 = vmatpush1.bf16.msra.mxu0 %v643
    %709 = vmatprep.subr.bf16.mxu0 %v646
    %710 = vmatpush1.bf16.msra.mxu0 %v645
    %711 = vmatprep.subr.bf16.mxu0 %v648
    %712 = vmatpush1.bf16.msra.mxu0 %v647
    %713 = vmatprep.subr.bf16.mxu0 %v650
    %714 = vmatpush1.bf16.msra.mxu0 %v649
    %715 = vmatprep.subr.bf16.mxu0 %v652
    %716 = vmatpush1.bf16.msra.mxu0 %v651
    %717 = vmatprep.subr.bf16.mxu0 %v654
    %718 = vmatpush1.bf16.msra.mxu0 %v653
    %719 = vmatprep.subr.bf16.mxu0 %v656
    %720 = vmatpush1.bf16.msra.mxu0 %v655
    %721 = vmatprep.subr.bf16.mxu0 %v658
    %722 = vmatpush1.bf16.msra.mxu0 %v657
    %723 = vmatprep.mubr.bf16.mxu0 %v518
    %724 = vmatmul.mubr.bf16.gmra.mrb[0].mxu0 %v517
    %v725 = vpop.f32.mrb[0].mxu0
    %v726 = vadd.f32 %v524, %v725
    %v727 = vpop.f32.mrb[0].mxu0
    %v728 = vadd.f32 %v528, %v727
    %v729 = vpop.f32.mrb[0].mxu0
    %v730 = vpop.f32.mrb[0].mxu0
    %731 = vdwg.mxu0
    %v732 = vadd.f32 %v726, %v234
    %v733 = vadd.f32 %v728, %v235
    %v734 = vtanh.pop %v732
    %v735 = vtanh.pop %v733
    %v736 = vld [vmem:[#allocation7] sm:$0xff]
    %v737 = vld [vmem:[#allocation7 + $0x8] sm:$0xff]
    %v738 = vld [vmem:[#allocation7 + $0x10] sm:$0xff]
    %v739 = vld [vmem:[#allocation7 + $0x18] sm:$0xff]
    %v740 = vld [vmem:[#allocation7 + $0x20] sm:$0xff]
    %v741 = vld [vmem:[#allocation7 + $0x28] sm:$0xff]
    %v742 = vld [vmem:[#allocation7 + $0x30] sm:$0xff]
    %v743 = vld [vmem:[#allocation7 + $0x38] sm:$0xff]
    %v744 = vld [vmem:[#allocation7 + $0x40] sm:$0xff]
    %v745 = vld [vmem:[#allocation7 + $0x48] sm:$0xff]
    %v746 = vld [vmem:[#allocation7 + $0x50] sm:$0xff]
    %v747 = vld [vmem:[#allocation7 + $0x58] sm:$0xff]
    %v748 = vld [vmem:[#allocation7 + $0x60] sm:$0xff]
    %v749 = vld [vmem:[#allocation7 + $0x68] sm:$0xff]
    %v750 = vld [vmem:[#allocation7 + $0x70] sm:$0xff]
    %v751 = vld [vmem:[#allocation7 + $0x78] sm:$0xff]
    %v752 = vld [vmem:[#allocation7 + $0x80] sm:$0xff]
    %v753 = vld [vmem:[#allocation7 + $0x88] sm:$0xff]
    %v754 = vld [vmem:[#allocation7 + $0x90] sm:$0xff]
    %v755 = vld [vmem:[#allocation7 + $0x98] sm:$0xff]
    %v756 = vld [vmem:[#allocation7 + $0xa0] sm:$0xff]
    %v757 = vld [vmem:[#allocation7 + $0xa8] sm:$0xff]
    %v758 = vld [vmem:[#allocation7 + $0xb0] sm:$0xff]
    %v759 = vld [vmem:[#allocation7 + $0xb8] sm:$0xff]
    %v760 = vld [vmem:[#allocation7 + $0xc0] sm:$0xff]
    %v761 = vld [vmem:[#allocation7 + $0xc8] sm:$0xff]
    %v762 = vld [vmem:[#allocation7 + $0xd0] sm:$0xff]
    %v763 = vld [vmem:[#allocation7 + $0xd8] sm:$0xff]
    %v764 = vld [vmem:[#allocation7 + $0xe0] sm:$0xff]
    %v765 = vld [vmem:[#allocation7 + $0xe8] sm:$0xff]
    %v766 = vld [vmem:[#allocation7 + $0xf0] sm:$0xff]
    %v767 = vld [vmem:[#allocation7 + $0xf8] sm:$0xff]
    %v768 = vpack.c.bf16 %v734, %v734
    %v769 = vpack.c.bf16 %v735, %v735
    %v770 = vld [vmem:[%s8] sm:$0x3]
    %v772 = vlaneseq
    %v773 = vshrl.u32 %v772, 7
    %v774 = vsub.s32 0, %v773
    %v775 = vrot.slane %v770, %v774
    %v776 = vlaneseq
    %v777 = vshrl.u32 %v776, 7
    %v778 = vsub.s32 1, %v777
    %v779 = vrot.slane %v770, %v778
    %v814 = vunpack.c.l.b16 %v736
    %v815 = vunpack.c.h.b16 %v736
    %v816 = vunpack.c.l.b16 %v737
    %v817 = vunpack.c.h.b16 %v737
    %v818 = vunpack.c.l.b16 %v738
    %v819 = vunpack.c.h.b16 %v738
    %v820 = vunpack.c.l.b16 %v739
    %v821 = vunpack.c.h.b16 %v739
    %v822 = vunpack.c.l.b16 %v740
    %v823 = vunpack.c.h.b16 %v740
    %v824 = vunpack.c.l.b16 %v741
    %v825 = vunpack.c.h.b16 %v741
    %v826 = vunpack.c.l.b16 %v742
    %v827 = vunpack.c.h.b16 %v742
    %v828 = vunpack.c.l.b16 %v743
    %v829 = vunpack.c.h.b16 %v743
    %v830 = vunpack.c.l.b16 %v744
    %v831 = vunpack.c.h.b16 %v744
    %v832 = vunpack.c.l.b16 %v745
    %v833 = vunpack.c.h.b16 %v745
    %v834 = vunpack.c.l.b16 %v746
    %v835 = vunpack.c.h.b16 %v746
    %v836 = vunpack.c.l.b16 %v747
    %v837 = vunpack.c.h.b16 %v747
    %v838 = vunpack.c.l.b16 %v748
    %v839 = vunpack.c.h.b16 %v748
    %v840 = vunpack.c.l.b16 %v749
    %v841 = vunpack.c.h.b16 %v749
    %v842 = vunpack.c.l.b16 %v750
    %v843 = vunpack.c.h.b16 %v750
    %v844 = vunpack.c.l.b16 %v751
    %v845 = vunpack.c.h.b16 %v751
    %v846 = vunpack.c.l.b16 %v752
    %v847 = vunpack.c.h.b16 %v752
    %v848 = vunpack.c.l.b16 %v753
    %v849 = vunpack.c.h.b16 %v753
    %v850 = vunpack.c.l.b16 %v754
    %v851 = vunpack.c.h.b16 %v754
    %v852 = vunpack.c.l.b16 %v755
    %v853 = vunpack.c.h.b16 %v755
    %v854 = vunpack.c.l.b16 %v756
    %v855 = vunpack.c.h.b16 %v756
    %v856 = vunpack.c.l.b16 %v757
    %v857 = vunpack.c.h.b16 %v757
    %v858 = vunpack.c.l.b16 %v758
    %v859 = vunpack.c.h.b16 %v758
    %v860 = vunpack.c.l.b16 %v759
    %v861 = vunpack.c.h.b16 %v759
    %v862 = vunpack.c.l.b16 %v760
    %v863 = vunpack.c.h.b16 %v760
    %v864 = vunpack.c.l.b16 %v761
    %v865 = vunpack.c.h.b16 %v761
    %v866 = vunpack.c.l.b16 %v762
    %v867 = vunpack.c.h.b16 %v762
    %v868 = vunpack.c.l.b16 %v763
    %v869 = vunpack.c.h.b16 %v763
    %v870 = vunpack.c.l.b16 %v764
    %v871 = vunpack.c.h.b16 %v764
    %v872 = vunpack.c.l.b16 %v765
    %v873 = vunpack.c.h.b16 %v765
    %v874 = vunpack.c.l.b16 %v766
    %v875 = vunpack.c.h.b16 %v766
    %v876 = vunpack.c.l.b16 %v767
    %v877 = vunpack.c.h.b16 %v767
    %v878 = vpack.c.b16 %v816, %v814
    %v879 = vpack.c.b16 %v817, %v815
    %v880 = vpack.c.b16 %v820, %v818
    %v881 = vpack.c.b16 %v821, %v819
    %v882 = vpack.c.b16 %v824, %v822
    %v883 = vpack.c.b16 %v825, %v823
    %v884 = vpack.c.b16 %v828, %v826
    %v885 = vpack.c.b16 %v829, %v827
    %v886 = vpack.c.b16 %v832, %v830
    %v887 = vpack.c.b16 %v833, %v831
    %v888 = vpack.c.b16 %v836, %v834
    %v889 = vpack.c.b16 %v837, %v835
    %v890 = vpack.c.b16 %v840, %v838
    %v891 = vpack.c.b16 %v841, %v839
    %v892 = vpack.c.b16 %v844, %v842
    %v893 = vpack.c.b16 %v845, %v843
    %v894 = vpack.c.b16 %v848, %v846
    %v895 = vpack.c.b16 %v849, %v847
    %v896 = vpack.c.b16 %v852, %v850
    %v897 = vpack.c.b16 %v853, %v851
    %v898 = vpack.c.b16 %v856, %v854
    %v899 = vpack.c.b16 %v857, %v855
    %v900 = vpack.c.b16 %v860, %v858
    %v901 = vpack.c.b16 %v861, %v859
    %v902 = vpack.c.b16 %v864, %v862
    %v903 = vpack.c.b16 %v865, %v863
    %v904 = vpack.c.b16 %v868, %v866
    %v905 = vpack.c.b16 %v869, %v867
    %v906 = vpack.c.b16 %v872, %v870
    %v907 = vpack.c.b16 %v873, %v871
    %v908 = vpack.c.b16 %v876, %v874
    %v909 = vpack.c.b16 %v877, %v875
    %942 = vmatprep.subr.bf16.mxu0 %v879
    %943 = vmatpush1.bf16.msra.mxu0 %v878
    %944 = vmatprep.subr.bf16.mxu0 %v881
    %945 = vmatpush1.bf16.msra.mxu0 %v880
    %946 = vmatprep.subr.bf16.mxu0 %v883
    %947 = vmatpush1.bf16.msra.mxu0 %v882
    %948 = vmatprep.subr.bf16.mxu0 %v885
    %949 = vmatpush1.bf16.msra.mxu0 %v884
    %950 = vmatprep.subr.bf16.mxu0 %v887
    %951 = vmatpush1.bf16.msra.mxu0 %v886
    %952 = vmatprep.subr.bf16.mxu0 %v889
    %953 = vmatpush1.bf16.msra.mxu0 %v888
    %954 = vmatprep.subr.bf16.mxu0 %v891
    %955 = vmatpush1.bf16.msra.mxu0 %v890
    %956 = vmatprep.subr.bf16.mxu0 %v893
    %957 = vmatpush1.bf16.msra.mxu0 %v892
    %958 = vmatprep.subr.bf16.mxu0 %v895
    %959 = vmatpush1.bf16.msra.mxu0 %v894
    %960 = vmatprep.subr.bf16.mxu0 %v897
    %961 = vmatpush1.bf16.msra.mxu0 %v896
    %962 = vmatprep.subr.bf16.mxu0 %v899
    %963 = vmatpush1.bf16.msra.mxu0 %v898
    %964 = vmatprep.subr.bf16.mxu0 %v901
    %965 = vmatpush1.bf16.msra.mxu0 %v900
    %966 = vmatprep.subr.bf16.mxu0 %v903
    %967 = vmatpush1.bf16.msra.mxu0 %v902
    %968 = vmatprep.subr.bf16.mxu0 %v905
    %969 = vmatpush1.bf16.msra.mxu0 %v904
    %970 = vmatprep.subr.bf16.mxu0 %v907
    %971 = vmatpush1.bf16.msra.mxu0 %v906
    %972 = vmatprep.subr.bf16.mxu0 %v909
    %973 = vmatpush1.bf16.msra.mxu0 %v908
    %974 = vmatprep.mubr.bf16.mxu0 %v769
    %975 = vmatmul.mubr.bf16.gmra.mrb[0].mxu0 %v768
    %v976 = vpop.f32.mrb[0].mxu0
    %v977 = vadd.f32 %v775, %v976
    %v978 = vpop.f32.mrb[0].mxu0
    %v979 = vadd.f32 %v779, %v978
    %v980 = vpop.f32.mrb[0].mxu0
    %v981 = vpop.f32.mrb[0].mxu0
    %982 = vdwg.mxu0
    %v983 = vtanh.pop %v977
    %v984 = vtanh.pop %v979
    %v985 = vld [vmem:[#allocation8] sm:$0xff]
    %v986 = vld [vmem:[#allocation8 + $0x8] sm:$0xff]
    %v987 = vld [vmem:[#allocation8 + $0x10] sm:$0xff]
    %v988 = vld [vmem:[#allocation8 + $0x18] sm:$0xff]
    %v989 = vld [vmem:[#allocation8 + $0x20] sm:$0xff]
    %v990 = vld [vmem:[#allocation8 + $0x28] sm:$0xff]
    %v991 = vld [vmem:[#allocation8 + $0x30] sm:$0xff]
    %v992 = vld [vmem:[#allocation8 + $0x38] sm:$0xff]
    %v993 = vld [vmem:[#allocation8 + $0x40] sm:$0xff]
    %v994 = vld [vmem:[#allocation8 + $0x48] sm:$0xff]
    %v995 = vld [vmem:[#allocation8 + $0x50] sm:$0xff]
    %v996 = vld [vmem:[#allocation8 + $0x58] sm:$0xff]
    %v997 = vld [vmem:[#allocation8 + $0x60] sm:$0xff]
    %v998 = vld [vmem:[#allocation8 + $0x68] sm:$0xff]
    %v999 = vld [vmem:[#allocation8 + $0x70] sm:$0xff]
    %v1000 = vld [vmem:[#allocation8 + $0x78] sm:$0xff]
    %v1001 = vld [vmem:[#allocation8 + $0x80] sm:$0xff]
    %v1002 = vld [vmem:[#allocation8 + $0x88] sm:$0xff]
    %v1003 = vld [vmem:[#allocation8 + $0x90] sm:$0xff]
    %v1004 = vld [vmem:[#allocation8 + $0x98] sm:$0xff]
    %v1005 = vld [vmem:[#allocation8 + $0xa0] sm:$0xff]
    %v1006 = vld [vmem:[#allocation8 + $0xa8] sm:$0xff]
    %v1007 = vld [vmem:[#allocation8 + $0xb0] sm:$0xff]
    %v1008 = vld [vmem:[#allocation8 + $0xb8] sm:$0xff]
    %v1009 = vld [vmem:[#allocation8 + $0xc0] sm:$0xff]
    %v1010 = vld [vmem:[#allocation8 + $0xc8] sm:$0xff]
    %v1011 = vld [vmem:[#allocation8 + $0xd0] sm:$0xff]
    %v1012 = vld [vmem:[#allocation8 + $0xd8] sm:$0xff]
    %v1013 = vld [vmem:[#allocation8 + $0xe0] sm:$0xff]
    %v1014 = vld [vmem:[#allocation8 + $0xe8] sm:$0xff]
    %v1015 = vld [vmem:[#allocation8 + $0xf0] sm:$0xff]
    %v1016 = vld [vmem:[#allocation8 + $0xf8] sm:$0xff]
    %v1017 = vpack.c.bf16 %v983, %v983
    %v1018 = vpack.c.bf16 %v984, %v984
    %v1019 = vld [vmem:[%s10] sm:$0x3]
    %v1021 = vlaneseq
    %v1022 = vshrl.u32 %v1021, 7
    %v1023 = vsub.s32 0, %v1022
    %v1024 = vrot.slane %v1019, %v1023
    %v1025 = vlaneseq
    %v1026 = vshrl.u32 %v1025, 7
    %v1027 = vsub.s32 1, %v1026
    %v1028 = vrot.slane %v1019, %v1027
    %v1063 = vunpack.c.l.b16 %v985
    %v1064 = vunpack.c.h.b16 %v985
    %v1065 = vunpack.c.l.b16 %v986
    %v1066 = vunpack.c.h.b16 %v986
    %v1067 = vunpack.c.l.b16 %v987
    %v1068 = vunpack.c.h.b16 %v987
    %v1069 = vunpack.c.l.b16 %v988
    %v1070 = vunpack.c.h.b16 %v988
    %v1071 = vunpack.c.l.b16 %v989
    %v1072 = vunpack.c.h.b16 %v989
    %v1073 = vunpack.c.l.b16 %v990
    %v1074 = vunpack.c.h.b16 %v990
    %v1075 = vunpack.c.l.b16 %v991
    %v1076 = vunpack.c.h.b16 %v991
    %v1077 = vunpack.c.l.b16 %v992
    %v1078 = vunpack.c.h.b16 %v992
    %v1079 = vunpack.c.l.b16 %v993
    %v1080 = vunpack.c.h.b16 %v993
    %v1081 = vunpack.c.l.b16 %v994
    %v1082 = vunpack.c.h.b16 %v994
    %v1083 = vunpack.c.l.b16 %v995
    %v1084 = vunpack.c.h.b16 %v995
    %v1085 = vunpack.c.l.b16 %v996
    %v1086 = vunpack.c.h.b16 %v996
    %v1087 = vunpack.c.l.b16 %v997
    %v1088 = vunpack.c.h.b16 %v997
    %v1089 = vunpack.c.l.b16 %v998
    %v1090 = vunpack.c.h.b16 %v998
    %v1091 = vunpack.c.l.b16 %v999
    %v1092 = vunpack.c.h.b16 %v999
    %v1093 = vunpack.c.l.b16 %v1000
    %v1094 = vunpack.c.h.b16 %v1000
    %v1095 = vunpack.c.l.b16 %v1001
    %v1096 = vunpack.c.h.b16 %v1001
    %v1097 = vunpack.c.l.b16 %v1002
    %v1098 = vunpack.c.h.b16 %v1002
    %v1099 = vunpack.c.l.b16 %v1003
    %v1100 = vunpack.c.h.b16 %v1003
    %v1101 = vunpack.c.l.b16 %v1004
    %v1102 = vunpack.c.h.b16 %v1004
    %v1103 = vunpack.c.l.b16 %v1005
    %v1104 = vunpack.c.h.b16 %v1005
    %v1105 = vunpack.c.l.b16 %v1006
    %v1106 = vunpack.c.h.b16 %v1006
    %v1107 = vunpack.c.l.b16 %v1007
    %v1108 = vunpack.c.h.b16 %v1007
    %v1109 = vunpack.c.l.b16 %v1008
    %v1110 = vunpack.c.h.b16 %v1008
    %v1111 = vunpack.c.l.b16 %v1009
    %v1112 = vunpack.c.h.b16 %v1009
    %v1113 = vunpack.c.l.b16 %v1010
    %v1114 = vunpack.c.h.b16 %v1010
    %v1115 = vunpack.c.l.b16 %v1011
    %v1116 = vunpack.c.h.b16 %v1011
    %v1117 = vunpack.c.l.b16 %v1012
    %v1118 = vunpack.c.h.b16 %v1012
    %v1119 = vunpack.c.l.b16 %v1013
    %v1120 = vunpack.c.h.b16 %v1013
    %v1121 = vunpack.c.l.b16 %v1014
    %v1122 = vunpack.c.h.b16 %v1014
    %v1123 = vunpack.c.l.b16 %v1015
    %v1124 = vunpack.c.h.b16 %v1015
    %v1125 = vunpack.c.l.b16 %v1016
    %v1126 = vunpack.c.h.b16 %v1016
    %v1127 = vpack.c.b16 %v1065, %v1063
    %v1128 = vpack.c.b16 %v1066, %v1064
    %v1129 = vpack.c.b16 %v1069, %v1067
    %v1130 = vpack.c.b16 %v1070, %v1068
    %v1131 = vpack.c.b16 %v1073, %v1071
    %v1132 = vpack.c.b16 %v1074, %v1072
    %v1133 = vpack.c.b16 %v1077, %v1075
    %v1134 = vpack.c.b16 %v1078, %v1076
    %v1135 = vpack.c.b16 %v1081, %v1079
    %v1136 = vpack.c.b16 %v1082, %v1080
    %v1137 = vpack.c.b16 %v1085, %v1083
    %v1138 = vpack.c.b16 %v1086, %v1084
    %v1139 = vpack.c.b16 %v1089, %v1087
    %v1140 = vpack.c.b16 %v1090, %v1088
    %v1141 = vpack.c.b16 %v1093, %v1091
    %v1142 = vpack.c.b16 %v1094, %v1092
    %v1143 = vpack.c.b16 %v1097, %v1095
    %v1144 = vpack.c.b16 %v1098, %v1096
    %v1145 = vpack.c.b16 %v1101, %v1099
    %v1146 = vpack.c.b16 %v1102, %v1100
    %v1147 = vpack.c.b16 %v1105, %v1103
    %v1148 = vpack.c.b16 %v1106, %v1104
    %v1149 = vpack.c.b16 %v1109, %v1107
    %v1150 = vpack.c.b16 %v1110, %v1108
    %v1151 = vpack.c.b16 %v1113, %v1111
    %v1152 = vpack.c.b16 %v1114, %v1112
    %v1153 = vpack.c.b16 %v1117, %v1115
    %v1154 = vpack.c.b16 %v1118, %v1116
    %v1155 = vpack.c.b16 %v1121, %v1119
    %v1156 = vpack.c.b16 %v1122, %v1120
    %v1157 = vpack.c.b16 %v1125, %v1123
    %v1158 = vpack.c.b16 %v1126, %v1124
    %1191 = vmatprep.subr.bf16.mxu0 %v1128
    %1192 = vmatpush1.bf16.msra.mxu0 %v1127
    %1193 = vmatprep.subr.bf16.mxu0 %v1130
    %1194 = vmatpush1.bf16.msra.mxu0 %v1129
    %1195 = vmatprep.subr.bf16.mxu0 %v1132
    %1196 = vmatpush1.bf16.msra.mxu0 %v1131
    %1197 = vmatprep.subr.bf16.mxu0 %v1134
    %1198 = vmatpush1.bf16.msra.mxu0 %v1133
    %1199 = vmatprep.subr.bf16.mxu0 %v1136
    %1200 = vmatpush1.bf16.msra.mxu0 %v1135
    %1201 = vmatprep.subr.bf16.mxu0 %v1138
    %1202 = vmatpush1.bf16.msra.mxu0 %v1137
    %1203 = vmatprep.subr.bf16.mxu0 %v1140
    %1204 = vmatpush1.bf16.msra.mxu0 %v1139
    %1205 = vmatprep.subr.bf16.mxu0 %v1142
    %1206 = vmatpush1.bf16.msra.mxu0 %v1141
    %1207 = vmatprep.subr.bf16.mxu0 %v1144
    %1208 = vmatpush1.bf16.msra.mxu0 %v1143
    %1209 = vmatprep.subr.bf16.mxu0 %v1146
    %1210 = vmatpush1.bf16.msra.mxu0 %v1145
    %1211 = vmatprep.subr.bf16.mxu0 %v1148
    %1212 = vmatpush1.bf16.msra.mxu0 %v1147
    %1213 = vmatprep.subr.bf16.mxu0 %v1150
    %1214 = vmatpush1.bf16.msra.mxu0 %v1149
    %1215 = vmatprep.subr.bf16.mxu0 %v1152
    %1216 = vmatpush1.bf16.msra.mxu0 %v1151
    %1217 = vmatprep.subr.bf16.mxu0 %v1154
    %1218 = vmatpush1.bf16.msra.mxu0 %v1153
    %1219 = vmatprep.subr.bf16.mxu0 %v1156
    %1220 = vmatpush1.bf16.msra.mxu0 %v1155
    %1221 = vmatprep.subr.bf16.mxu0 %v1158
    %1222 = vmatpush1.bf16.msra.mxu0 %v1157
    %1223 = vmatprep.mubr.bf16.mxu0 %v1018
    %1224 = vmatmul.mubr.bf16.gmra.mrb[0].mxu0 %v1017
    %v1225 = vpop.f32.mrb[0].mxu0
    %v1226 = vadd.f32 %v1024, %v1225
    %v1227 = vpop.f32.mrb[0].mxu0
    %v1228 = vadd.f32 %v1028, %v1227
    %v1229 = vpop.f32.mrb[0].mxu0
    %v1230 = vpop.f32.mrb[0].mxu0
    %1231 = vdwg.mxu0
    %v1232 = vadd.f32 %v1226, %v734
    %v1233 = vadd.f32 %v1228, %v735
    %v1234 = vtanh.pop %v1232
    %v1235 = vtanh.pop %v1233
    %v1236 = vld [vmem:[#allocation10] sm:$0xf]
    %v1237 = vld [vmem:[#allocation10 + $0x4] sm:$0xf]
    %v1238 = vld [vmem:[#allocation10 + $0x8] sm:$0xf]
    %v1239 = vld [vmem:[#allocation10 + $0xc] sm:$0xf]
    %v1240 = vld [vmem:[#allocation10 + $0x10] sm:$0xf]
    %v1241 = vld [vmem:[#allocation10 + $0x14] sm:$0xf]
    %v1242 = vld [vmem:[#allocation10 + $0x18] sm:$0xf]
    %v1243 = vld [vmem:[#allocation10 + $0x1c] sm:$0xf]
    %v1244 = vld [vmem:[#allocation10 + $0x20] sm:$0xf]
    %v1245 = vld [vmem:[#allocation10 + $0x24] sm:$0xf]
    %v1246 = vld [vmem:[#allocation10 + $0x28] sm:$0xf]
    %v1247 = vld [vmem:[#allocation10 + $0x2c] sm:$0xf]
    %v1248 = vld [vmem:[#allocation10 + $0x30] sm:$0xf]
    %v1249 = vld [vmem:[#allocation10 + $0x34] sm:$0xf]
    %v1250 = vld [vmem:[#allocation10 + $0x38] sm:$0xf]
    %v1251 = vld [vmem:[#allocation10 + $0x3c] sm:$0xf]
    %v1252 = vld [vmem:[#allocation10 + $0x40] sm:$0xf]
    %v1253 = vld [vmem:[#allocation10 + $0x44] sm:$0xf]
    %v1254 = vld [vmem:[#allocation10 + $0x48] sm:$0xf]
    %v1255 = vld [vmem:[#allocation10 + $0x4c] sm:$0xf]
    %v1256 = vld [vmem:[#allocation10 + $0x50] sm:$0xf]
    %v1257 = vld [vmem:[#allocation10 + $0x54] sm:$0xf]
    %v1258 = vld [vmem:[#allocation10 + $0x58] sm:$0xf]
    %v1259 = vld [vmem:[#allocation10 + $0x5c] sm:$0xf]
    %v1260 = vld [vmem:[#allocation10 + $0x60] sm:$0xf]
    %v1261 = vld [vmem:[#allocation10 + $0x64] sm:$0xf]
    %v1262 = vld [vmem:[#allocation10 + $0x68] sm:$0xf]
    %v1263 = vld [vmem:[#allocation10 + $0x6c] sm:$0xf]
    %v1264 = vld [vmem:[#allocation10 + $0x70] sm:$0xf]
    %v1265 = vld [vmem:[#allocation10 + $0x74] sm:$0xf]
    %v1266 = vld [vmem:[#allocation10 + $0x78] sm:$0xf]
    %v1267 = vld [vmem:[#allocation10 + $0x7c] sm:$0xf]
    %v1268 = vpack.c.bf16 %v1234, %v1234
    %v1269 = vpack.c.bf16 %v1235, %v1235
    %v1270 = vld [vmem:[%s12] sm:$0x1]
    %v1272 = vlaneseq
    %v1273 = vshrl.u32 %v1272, 7
    %v1274 = vsub.s32 0, %v1273
    %v1275 = vrot.slane %v1270, %v1274
    %v1309 = vunpack.c.l.b16 %v1236
    %v1310 = vunpack.c.l.b16 %v1237
    %v1311 = vunpack.c.l.b16 %v1238
    %v1312 = vunpack.c.l.b16 %v1239
    %v1313 = vunpack.c.l.b16 %v1240
    %v1314 = vunpack.c.l.b16 %v1241
    %v1315 = vunpack.c.l.b16 %v1242
    %v1316 = vunpack.c.l.b16 %v1243
    %v1317 = vunpack.c.l.b16 %v1244
    %v1318 = vunpack.c.l.b16 %v1245
    %v1319 = vunpack.c.l.b16 %v1246
    %v1320 = vunpack.c.l.b16 %v1247
    %v1321 = vunpack.c.l.b16 %v1248
    %v1322 = vunpack.c.l.b16 %v1249
    %v1323 = vunpack.c.l.b16 %v1250
    %v1324 = vunpack.c.l.b16 %v1251
    %v1325 = vunpack.c.l.b16 %v1252
    %v1326 = vunpack.c.l.b16 %v1253
    %v1327 = vunpack.c.l.b16 %v1254
    %v1328 = vunpack.c.l.b16 %v1255
    %v1329 = vunpack.c.l.b16 %v1256
    %v1330 = vunpack.c.l.b16 %v1257
    %v1331 = vunpack.c.l.b16 %v1258
    %v1332 = vunpack.c.l.b16 %v1259
    %v1333 = vunpack.c.l.b16 %v1260
    %v1334 = vunpack.c.l.b16 %v1261
    %v1335 = vunpack.c.l.b16 %v1262
    %v1336 = vunpack.c.l.b16 %v1263
    %v1337 = vunpack.c.l.b16 %v1264
    %v1338 = vunpack.c.l.b16 %v1265
    %v1339 = vunpack.c.l.b16 %v1266
    %v1340 = vunpack.c.l.b16 %v1267
    %v1341 = vpack.c.b16 %v1310, %v1309
    %v1342 = vpack.c.b16 %v1312, %v1311
    %v1343 = vpack.c.b16 %v1314, %v1313
    %v1344 = vpack.c.b16 %v1316, %v1315
    %v1345 = vpack.c.b16 %v1318, %v1317
    %v1346 = vpack.c.b16 %v1320, %v1319
    %v1347 = vpack.c.b16 %v1322, %v1321
    %v1348 = vpack.c.b16 %v1324, %v1323
    %v1349 = vpack.c.b16 %v1326, %v1325
    %v1350 = vpack.c.b16 %v1328, %v1327
    %v1351 = vpack.c.b16 %v1330, %v1329
    %v1352 = vpack.c.b16 %v1332, %v1331
    %v1353 = vpack.c.b16 %v1334, %v1333
    %v1354 = vpack.c.b16 %v1336, %v1335
    %v1355 = vpack.c.b16 %v1338, %v1337
    %v1356 = vpack.c.b16 %v1340, %v1339
    %1373 = vmatprep.subr.bf16.mxu0 0
    %1374 = vmatpush1.bf16.msra.mxu0 %v1341
    %1375 = vmatprep.subr.bf16.mxu0 0
    %1376 = vmatpush1.bf16.msra.mxu0 %v1342
    %1377 = vmatprep.subr.bf16.mxu0 0
    %1378 = vmatpush1.bf16.msra.mxu0 %v1343
    %1379 = vmatprep.subr.bf16.mxu0 0
    %1380 = vmatpush1.bf16.msra.mxu0 %v1344
    %1381 = vmatprep.subr.bf16.mxu0 0
    %1382 = vmatpush1.bf16.msra.mxu0 %v1345
    %1383 = vmatprep.subr.bf16.mxu0 0
    %1384 = vmatpush1.bf16.msra.mxu0 %v1346
    %1385 = vmatprep.subr.bf16.mxu0 0
    %1386 = vmatpush1.bf16.msra.mxu0 %v1347
    %1387 = vmatprep.subr.bf16.mxu0 0
    %1388 = vmatpush1.bf16.msra.mxu0 %v1348
    %1389 = vmatprep.subr.bf16.mxu0 0
    %1390 = vmatpush1.bf16.msra.mxu0 %v1349
    %1391 = vmatprep.subr.bf16.mxu0 0
    %1392 = vmatpush1.bf16.msra.mxu0 %v1350
    %1393 = vmatprep.subr.bf16.mxu0 0
    %1394 = vmatpush1.bf16.msra.mxu0 %v1351
    %1395 = vmatprep.subr.bf16.mxu0 0
    %1396 = vmatpush1.bf16.msra.mxu0 %v1352
    %1397 = vmatprep.subr.bf16.mxu0 0
    %1398 = vmatpush1.bf16.msra.mxu0 %v1353
    %1399 = vmatprep.subr.bf16.mxu0 0
    %1400 = vmatpush1.bf16.msra.mxu0 %v1354
    %1401 = vmatprep.subr.bf16.mxu0 0
    %1402 = vmatpush1.bf16.msra.mxu0 %v1355
    %1403 = vmatprep.subr.bf16.mxu0 0
    %1404 = vmatpush1.bf16.msra.mxu0 %v1356
    %1405 = vmatprep.mubr.bf16.mxu0 %v1269
    %1406 = vmatmul.mubr.bf16.gmra.mrb[0].mxu0 %v1268
    %v1407 = vpop.f32.mrb[0].mxu0
    %v1408 = vadd.f32 %v1275, %v1407
    %v1409 = vpop.f32.mrb[0].mxu0
    %v1410 = vpop.f32.mrb[0].mxu0
    %v1411 = vpop.f32.mrb[0].mxu0
    %1412 = vdwg.mxu0
    %v1413 = vtanh.pop %v1408
    %1414 = vst [vmem:[#allocation11] sm:$0xff] %v1413
    // Predicated region
    $region74: #{tpu_custom_call.1} parent=1 // pred_check
      _
    $region75: #{tpu_custom_call.1} parent=1 // pred_check_branch
      %1416 = sbr.rel (0) target = $region77
    $region76: #{tpu_custom_call.1} parent=1 // pred_region
      %s1418 = ssub.s32 128, 128
      %1419 = vsyncadd [#allocation4], %s1418
      %s1421 = sshll.u32 [#allocation11], 4
      %s1422 = int_to_ptr.vmem [resolvable:$true] %s1421
      %1424 = dma.vmem_to_hbm [thread:$0]  %s1422, 128, %s13, [#allocation4]
    $region77: #{tpu_custom_call.1} parent=1 // pred_fallthru
      _
    // Predicated region
    $region78: #{tpu_custom_call.1} parent=1 // pred_check
      _
    $region79: #{tpu_custom_call.1} parent=1 // pred_check_branch
      %1426 = sbr.rel (0) target = $region81
    $region80: #{tpu_custom_call.1} parent=1 // pred_region
      %1427 = dma.done [#allocation4], 128
    $region81: #{tpu_custom_call.1} parent=1 // pred_fallthru
      _
    %1428 = vsyncpa [#allocation3], 1
    %1429 = vsyncpa [#allocation6], 1
    %1430 = vsyncpa [#allocation9], 1
    %1431 = vsyncpa [#allocation4], 1

</llo_original>
